<compile_context>
chip_gen: v6e
topology: v6e:2x2x1
jax: 0.10.0
libtpu: 0.0.40
codegen_flags: <defaults>
</compile_context>

<pallas_src>
import jax
import jax.numpy as jnp
from jax.experimental import pallas as pl
from jax.experimental.pallas import tpu as pltpu

# Cora dataset constants
NUM_FEATURES = 1433
NUM_CLASSES = 7
HIDDEN_CHANNELS = 16

LANE = 128
SUBLANE = 8
MAX_TILE_ROWS = 1024  # <=1024-row f32 tiles double-buffer within v5e's scoped VMEM too


def _round_up(x, m):
    return ((x + m - 1) // m) * m


def mlp_kernel(x_ref, w1_ref, b1_ref, w2_ref, b2_ref, o_ref):
    # lin1: cast the streamed f32 tile to bf16 (VPU pass, hidden under the DMA) and hit
    # the MXU with f32 accumulation. K = 1433 is layout-padded/masked by Mosaic.
    x_bf = x_ref[...].astype(jnp.bfloat16)
    h = jnp.dot(x_bf, w1_ref[...], preferred_element_type=jnp.float32)
    # bias + relu
    h = jnp.maximum(h + b1_ref[...], 0.0)
    # dropout (eval mode) -> identity
    # lin2: tiny bf16 matmul, f32 accumulate, lane-dense 128-wide store.
    out = jnp.dot(h.astype(jnp.bfloat16), w2_ref[...],
                  preferred_element_type=jnp.float32)
    o_ref[...] = (out + b2_ref[...]).astype(o_ref.dtype)


def prepare_params(w1, b1, w2, b2):
    """One-time staging of the (tiny) weights, hoisted out of the per-call path.

    w1: [F, H], b1: [1, H] or [H], w2: [H, C], b2: [1, C] or [C].
    H and C are lane-padded to 128; matmul operands are cast to bf16.
    """
    F, H = w1.shape
    C = w2.shape[1]
    H_pad = _round_up(H, LANE)   # 16 -> 128
    C_pad = _round_up(C, LANE)   # 7  -> 128
    w1_p = jnp.zeros((F, H_pad), jnp.bfloat16).at[:, :H].set(w1.astype(jnp.bfloat16))
    b1_p = jnp.zeros((1, H_pad), jnp.float32).at[0, :H].set(
        b1.reshape(-1).astype(jnp.float32))
    w2_p = jnp.zeros((H_pad, C_pad), jnp.bfloat16).at[:H, :C].set(
        w2.astype(jnp.bfloat16))
    b2_p = jnp.zeros((1, C_pad), jnp.float32).at[0, :C].set(
        b2.reshape(-1).astype(jnp.float32))
    return {"w1": w1_p, "b1": b1_p, "w2": w2_p, "b2": b2_p, "num_classes": C}


def mlp_forward(x, params, *, tile_n=None):
    """relu(x @ w1 + b1) @ w2 + b2 with eval-mode dropout.  Returns [N, C] float32."""
    N, F = x.shape
    w1_p, b1_p = params["w1"], params["b1"]
    w2_p, b2_p = params["w2"], params["b2"]
    C = params["num_classes"]
    assert w1_p.shape[0] == F, "feature dim mismatch between x and staged w1"
    H_pad = w1_p.shape[1]
    C_pad = w2_p.shape[1]

    if tile_n is None:
        if N <= MAX_TILE_ROWS:
            # Single tile: v5e/v6e have one TensorCore, so splitting small N only adds
            # per-step overhead. (A 2-way split would help v7x slightly at small N.)
            tile_n = max(SUBLANE, _round_up(N, SUBLANE))
        else:
            # <=1024-row tiles; round the tile so the parallel grid length is even so
            # both v7x TensorCores stay busy on the trailing steps.
            n_tiles = pl.cdiv(N, MAX_TILE_ROWS)
            n_tiles += n_tiles % 2
            tile_n = _round_up(pl.cdiv(N, n_tiles), SUBLANE)
    tile_n = min(_round_up(tile_n, SUBLANE), _round_up(N, SUBLANE))
    grid = (pl.cdiv(N, tile_n),)   # no divisibility requirement; boundary rows are
                                   # never written back (out has exactly N rows)

    x_itemsize = jnp.dtype(x.dtype).itemsize
    cost = pl.CostEstimate(
        flops=2 * N * (F * H_pad + H_pad * C_pad),
        transcendentals=0,
        bytes_accessed=(N * F * x_itemsize            # streamed x (no staging pass)
                        + w1_p.size * 2 + w2_p.size * 2
                        + (b1_p.size + b2_p.size) * 4
                        + N * C_pad * 4),             # f32 output, lane-padded classes
    )

    out_p = pl.pallas_call(
        mlp_kernel,
        out_shape=jax.ShapeDtypeStruct((N, C_pad), jnp.float32),
        grid_spec=pltpu.PrefetchScalarGridSpec(
            num_scalar_prefetch=0,
            grid=grid,
            in_specs=[
                pl.BlockSpec((tile_n, F), lambda i: (i, 0)),      # x tile, streamed f32
                pl.BlockSpec((F, H_pad), lambda i: (0, 0)),       # W1 (VMEM-resident bf16)
                pl.BlockSpec((1, H_pad), lambda i: (0, 0)),       # b1
                pl.BlockSpec((H_pad, C_pad), lambda i: (0, 0)),   # W2 (bf16)
                pl.BlockSpec((1, C_pad), lambda i: (0, 0)),       # b2
            ],
            out_specs=pl.BlockSpec((tile_n, C_pad), lambda i: (i, 0)),
        ),
        compiler_params=pltpu.CompilerParams(
            dimension_semantics=("parallel",),
            # Explicit scoped-VMEM budget: a 1024-row f32 tile is ~5.9 MiB, ~13.5 MiB
            # total with double buffering -- over v5e's 16 MiB default, well under 32.
            vmem_limit_bytes=32 * 1024 * 1024,
        ),
        cost_estimate=cost,
    )(x, w1_p, b1_p, w2_p, b2_p)

    # Drop only the class lane-padding (kept 128-wide in-kernel for lane-dense stores).
    return out_p[:, :C]


def init_params(key, num_features, hidden, num_classes):
    """Deterministic synthetic init, roughly matching nn.Linear's uniform init."""
    k1, k2, k3, k4 = jax.random.split(key, 4)
    bound1 = 1.0 / jnp.sqrt(num_features)
    bound2 = 1.0 / jnp.sqrt(hidden)
    # stored as [in, out] (transposed vs. PyTorch's [out, in])
    w1 = jax.random.uniform(k1, (num_features, hidden), jnp.float32, -bound1, bound1)
    b1 = jax.random.uniform(k2, (1, hidden), jnp.float32, -bound1, bound1)
    w2 = jax.random.uniform(k3, (hidden, num_classes), jnp.float32, -bound2, bound2)
    b2 = jax.random.uniform(k4, (1, num_classes), jnp.float32, -bound2, bound2)
    return w1, b1, w2, b2


if __name__ == "__main__":
    key = jax.random.PRNGKey(0)
    kx, kp = jax.random.split(key)

    # Small node batch consistent with the Cora MLP forward (N x num_features).
    N = 256
    x = jax.random.uniform(kx, (N, NUM_FEATURES), jnp.float32)
    # mimic NormalizeFeatures(): row-normalize to sum 1
    x = x / jnp.clip(jnp.sum(x, axis=-1, keepdims=True), 1e-12)

    w1, b1, w2, b2 = init_params(kp, NUM_FEATURES, HIDDEN_CHANNELS, NUM_CLASSES)
    params = prepare_params(w1, b1, w2, b2)   # staged once, outside the hot path

    fwd = jax.jit(lambda xx: mlp_forward(xx, params))
    out = jax.block_until_ready(fwd(x))
    assert out.shape == (N, NUM_CLASSES)

    # Tight check vs. a reference that mirrors the kernel's bf16 rounding.
    f32 = jnp.float32
    x_bf = x.astype(jnp.bfloat16).astype(f32)
    w1_bf = w1.astype(jnp.bfloat16).astype(f32)
    w2_bf = w2.astype(jnp.bfloat16).astype(f32)
    h_ref = jnp.maximum(x_bf @ w1_bf + b1, 0.0)
    ref_bf = h_ref.astype(jnp.bfloat16).astype(f32) @ w2_bf + b2
    assert jnp.allclose(out, ref_bf, atol=2e-3, rtol=2e-3), \
        float(jnp.max(jnp.abs(out - ref_bf)))

    # Loose check vs. the full-f32 reference (bf16 MXU rounding is the only delta).
    ref_f32 = jnp.maximum(x @ w1 + b1, 0.0) @ w2 + b2
    assert jnp.allclose(out, ref_f32, atol=3e-2, rtol=3e-2)

    # Also exercise the multi-tile path with a non-divisible boundary block.
    out_mt = jax.block_until_ready(mlp_forward(x, params, tile_n=104))  # grid = 3
    assert out_mt.shape == (N, NUM_CLASSES)
    assert jnp.allclose(out_mt, ref_bf, atol=2e-3, rtol=2e-3)

    print("KERNEL_OK")
</pallas_src>

<mosaic_0001>
module attributes {stable_mosaic.version = 11 : i64} {
  func.func @mlp_kernel(%arg0: i32, %arg1: memref<256x1433xf32, #tpu.memory_space<vmem>>, %arg2: memref<1433x128xbf16, #tpu.memory_space<vmem>>, %arg3: memref<1x128xf32, #tpu.memory_space<vmem>>, %arg4: memref<128x128xbf16, #tpu.memory_space<vmem>>, %arg5: memref<1x128xf32, #tpu.memory_space<vmem>>, %arg6: memref<256x128xf32, #tpu.memory_space<vmem>>) attributes {dimension_semantics = [#tpu.dimension_semantics<parallel>], iteration_bounds = array<i64: 1>, scalar_prefetch = 0 : i64, scratch_operands = 0 : i64, tpu.core_type = #tpu.core_type<tc>, window_params = [{transform_indices = @transform_0, window_bounds = array<i64: 256, 1433>}, {pipeline_mode = #tpu.pipeline_mode<synchronous>, transform_indices = @transform_1, window_bounds = array<i64: 1433, 128>}, {pipeline_mode = #tpu.pipeline_mode<synchronous>, transform_indices = @transform_2, window_bounds = array<i64: 1, 128>}, {pipeline_mode = #tpu.pipeline_mode<synchronous>, transform_indices = @transform_3, window_bounds = array<i64: 128, 128>}, {pipeline_mode = #tpu.pipeline_mode<synchronous>, transform_indices = @transform_4, window_bounds = array<i64: 1, 128>}, {transform_indices = @transform_5, window_bounds = array<i64: 256, 128>}]} {
    %c0 = arith.constant 0 : index
    %c0_0 = arith.constant 0 : index
    %0 = vector.load %arg1[%c0, %c0_0] : memref<256x1433xf32, #tpu.memory_space<vmem>>, vector<256x1433xf32>
    %1 = arith.truncf %0 : vector<256x1433xf32> to vector<256x1433xbf16>
    %c0_1 = arith.constant 0 : index
    %c0_2 = arith.constant 0 : index
    %2 = vector.load %arg2[%c0_1, %c0_2] : memref<1433x128xbf16, #tpu.memory_space<vmem>>, vector<1433x128xbf16>
    %cst = arith.constant dense<0.000000e+00> : vector<256x128xf32>
    %3 = tpu.matmul %1, %2, %cst {dimension_numbers = #tpu.dot_dimension_numbers<[1], [0], [0], [1], [0, 0, 1, 1], [], []>} : vector<256x1433xbf16>, vector<1433x128xbf16>, vector<256x128xf32> -> vector<256x128xf32>
    %c0_3 = arith.constant 0 : index
    %c0_4 = arith.constant 0 : index
    %4 = vector.load %arg3[%c0_3, %c0_4] : memref<1x128xf32, #tpu.memory_space<vmem>>, vector<1x128xf32>
    %5 = vector.broadcast %4 : vector<1x128xf32> to vector<256x128xf32>
    %6 = arith.addf %3, %5 : vector<256x128xf32>
    %cst_5 = arith.constant 0.000000e+00 : f32
    %7 = vector.broadcast %cst_5 : f32 to vector<256x128xf32>
    %8 = arith.maximumf %6, %7 : vector<256x128xf32>
    %9 = arith.truncf %8 : vector<256x128xf32> to vector<256x128xbf16>
    %c0_6 = arith.constant 0 : index
    %c0_7 = arith.constant 0 : index
    %10 = vector.load %arg4[%c0_6, %c0_7] : memref<128x128xbf16, #tpu.memory_space<vmem>>, vector<128x128xbf16>
    %cst_8 = arith.constant dense<0.000000e+00> : vector<256x128xf32>
    %11 = tpu.matmul %9, %10, %cst_8 {dimension_numbers = #tpu.dot_dimension_numbers<[1], [0], [0], [1], [0, 0, 1, 1], [], []>} : vector<256x128xbf16>, vector<128x128xbf16>, vector<256x128xf32> -> vector<256x128xf32>
    %c0_9 = arith.constant 0 : index
    %c0_10 = arith.constant 0 : index
    %12 = vector.load %arg5[%c0_9, %c0_10] : memref<1x128xf32, #tpu.memory_space<vmem>>, vector<1x128xf32>
    %13 = vector.broadcast %12 : vector<1x128xf32> to vector<256x128xf32>
    %14 = arith.addf %11, %13 : vector<256x128xf32>
    %c0_11 = arith.constant 0 : index
    %c0_12 = arith.constant 0 : index
    %15 = vector.load %arg6[%c0_11, %c0_12] : memref<256x128xf32, #tpu.memory_space<vmem>>, vector<256x128xf32>
    tpu.vector_store %arg6[%c0_11, %c0_12], %14 {strides = array<i32>} : memref<256x128xf32, #tpu.memory_space<vmem>>, vector<256x128xf32>,
    return
  }
  func.func @transform_0(%arg0: i32) -> (i32, i32) {
    %c0_i32 = arith.constant 0 : i32
    %c0_i32_0 = arith.constant 0 : i32
    return %arg0, %c0_i32 : i32, i32
  }
  func.func @transform_1(%arg0: i32) -> (i32, i32) {
    %c0_i32 = arith.constant 0 : i32
    %c0_i32_0 = arith.constant 0 : i32
    %c0_i32_1 = arith.constant 0 : i32
    return %c0_i32, %c0_i32_0 : i32, i32
  }
  func.func @transform_2(%arg0: i32) -> (i32, i32) {
    %c0_i32 = arith.constant 0 : i32
    %c0_i32_0 = arith.constant 0 : i32
    %c0_i32_1 = arith.constant 0 : i32
    return %c0_i32, %c0_i32_0 : i32, i32
  }
  func.func @transform_3(%arg0: i32) -> (i32, i32) {
    %c0_i32 = arith.constant 0 : i32
    %c0_i32_0 = arith.constant 0 : i32
    %c0_i32_1 = arith.constant 0 : i32
    return %c0_i32, %c0_i32_0 : i32, i32
  }
  func.func @transform_4(%arg0: i32) -> (i32, i32) {
    %c0_i32 = arith.constant 0 : i32
    %c0_i32_0 = arith.constant 0 : i32
    %c0_i32_1 = arith.constant 0 : i32
    return %c0_i32, %c0_i32_0 : i32, i32
  }
  func.func @transform_5(%arg0: i32) -> (i32, i32) {
    %c0_i32 = arith.constant 0 : i32
    %c0_i32_0 = arith.constant 0 : i32
    return %arg0, %c0_i32 : i32, i32
  }
}

</mosaic_0001>

<llo_original>
// kernel: _lambda_.1
$region0: #{_lambda_.1}
  #allocation0 [shape = 'u32[]', space=smem, size = 0x4, offset = 0x4, fixed_abs, tag = 'smem constant byte address 0x4 - core index']
  #allocation1 [shape = 'u32[144,128]{1,0:T(1,128)}', space=vmem, size = 0x12000, scoped, tag = 'internal scratch']
  %s0 = inlined_call_operand.vmem [shape: f32[256,1433], index: 0, kind: input, shape index: {}]
  %s1 = inlined_call_operand.vmem [shape: bf16[1433,128], index: 1, kind: input, shape index: {}]
  %s2 = inlined_call_operand.vmem [shape: f32[1,128], index: 2, kind: input, shape index: {}]
  %s3 = inlined_call_operand.vmem [shape: bf16[128,128], index: 3, kind: input, shape index: {}]
  %s4 = inlined_call_operand.vmem [shape: f32[1,128], index: 4, kind: input, shape index: {}]
  %s5 = inlined_call_operand.vmem [shape: f32[256,128], index: 5, kind: output, shape index: {}]
  %s6 = sld [smem:[#allocation0]]
  $region30: #{_lambda_.1} parent=0
    _
  %s8 = ssub.s32 1, %s6
  %s9 = scalar_select 0, %s8, %s6
  // Predicated region
  $region2: #{_lambda_.1} parent=0 // pred_check
    _
  $region3: #{_lambda_.1} parent=0 // pred_check_branch
    %11 = sbr.rel (0) target = $region5
  $region4: #{_lambda_.1} parent=0 // pred_region
    _
  $region5: #{_lambda_.1} parent=0 // pred_fallthru
    _
  // Predicated region
  $region6: #{_lambda_.1} parent=0 // pred_check
    _
  $region7: #{_lambda_.1} parent=0 // pred_check_branch
    %13 = sbr.rel (0) target = $region9
  $region8: #{_lambda_.1} parent=0 // pred_region
    _
  $region9: #{_lambda_.1} parent=0 // pred_fallthru
    _
  // Predicated region
  $region10: #{_lambda_.1} parent=0 // pred_check
    _
  $region11: #{_lambda_.1} parent=0 // pred_check_branch
    %15 = sbr.rel (0) target = $region13
  $region12: #{_lambda_.1} parent=0 // pred_region
    _
  $region13: #{_lambda_.1} parent=0 // pred_fallthru
    _
  // Predicated region
  $region14: #{_lambda_.1} parent=0 // pred_check
    _
  $region15: #{_lambda_.1} parent=0 // pred_check_branch
    %17 = sbr.rel (0) target = $region17
  $region16: #{_lambda_.1} parent=0 // pred_region
    _
  $region17: #{_lambda_.1} parent=0 // pred_fallthru
    _
  // Predicated region
  $region18: #{_lambda_.1} parent=0 // pred_check
    _
  $region19: #{_lambda_.1} parent=0 // pred_check_branch
    %19 = sbr.rel (0) target = $region21
  $region20: #{_lambda_.1} parent=0 // pred_region
    _
  $region21: #{_lambda_.1} parent=0 // pred_fallthru
    _
  %v21 = vld [vmem:[%s0] sm:$0xff]
  %v22 = vld [vmem:[%s0 + $0x8] sm:$0xff]
  %v23 = vld [vmem:[%s0 + $0x10] sm:$0xff]
  %v24 = vld [vmem:[%s0 + $0x18] sm:$0xff]
  %v25 = vld [vmem:[%s0 + $0x20] sm:$0xff]
  %v26 = vld [vmem:[%s0 + $0x28] sm:$0xff]
  %v27 = vld [vmem:[%s0 + $0x30] sm:$0xff]
  %v28 = vld [vmem:[%s0 + $0x38] sm:$0xff]
  %v29 = vld [vmem:[%s0 + $0x40] sm:$0xff]
  %v30 = vld [vmem:[%s0 + $0x48] sm:$0xff]
  %v31 = vld [vmem:[%s0 + $0x50] sm:$0xff]
  %v32 = vld [vmem:[%s0 + $0x58] sm:$0xff]
  %v33 = vld [vmem:[%s0 + $0x60] sm:$0xff]
  %v34 = vld [vmem:[%s0 + $0x68] sm:$0xff]
  %v35 = vld [vmem:[%s0 + $0x70] sm:$0xff]
  %v36 = vld [vmem:[%s0 + $0x78] sm:$0xff]
  %v37 = vld [vmem:[%s0 + $0x80] sm:$0xff]
  %v38 = vld [vmem:[%s0 + $0x88] sm:$0xff]
  %v39 = vld [vmem:[%s0 + $0x90] sm:$0xff]
  %v40 = vld [vmem:[%s0 + $0x98] sm:$0xff]
  %v41 = vld [vmem:[%s0 + $0xa0] sm:$0xff]
  %v42 = vld [vmem:[%s0 + $0xa8] sm:$0xff]
  %v43 = vld [vmem:[%s0 + $0xb0] sm:$0xff]
  %v44 = vld [vmem:[%s0 + $0xb8] sm:$0xff]
  %v45 = vld [vmem:[%s0 + $0xc0] sm:$0xff]
  %v46 = vld [vmem:[%s0 + $0xc8] sm:$0xff]
  %v47 = vld [vmem:[%s0 + $0xd0] sm:$0xff]
  %v48 = vld [vmem:[%s0 + $0xd8] sm:$0xff]
  %v49 = vld [vmem:[%s0 + $0xe0] sm:$0xff]
  %v50 = vld [vmem:[%s0 + $0xe8] sm:$0xff]
  %v51 = vld [vmem:[%s0 + $0xf0] sm:$0xff]
  %v52 = vld [vmem:[%s0 + $0xf8] sm:$0xff]
  %v53 = vld [vmem:[%s0 + $0x100] sm:$0xff]
  %v54 = vld [vmem:[%s0 + $0x108] sm:$0xff]
  %v55 = vld [vmem:[%s0 + $0x110] sm:$0xff]
  %v56 = vld [vmem:[%s0 + $0x118] sm:$0xff]
  %v57 = vld [vmem:[%s0 + $0x120] sm:$0xff]
  %v58 = vld [vmem:[%s0 + $0x128] sm:$0xff]
  %v59 = vld [vmem:[%s0 + $0x130] sm:$0xff]
  %v60 = vld [vmem:[%s0 + $0x138] sm:$0xff]
  %v61 = vld [vmem:[%s0 + $0x140] sm:$0xff]
  %v62 = vld [vmem:[%s0 + $0x148] sm:$0xff]
  %v63 = vld [vmem:[%s0 + $0x150] sm:$0xff]
  %v64 = vld [vmem:[%s0 + $0x158] sm:$0xff]
  %v65 = vld [vmem:[%s0 + $0x160] sm:$0xff]
  %v66 = vld [vmem:[%s0 + $0x168] sm:$0xff]
  %v67 = vld [vmem:[%s0 + $0x170] sm:$0xff]
  %v68 = vld [vmem:[%s0 + $0x178] sm:$0xff]
  %v69 = vld [vmem:[%s0 + $0x180] sm:$0xff]
  %v70 = vld [vmem:[%s0 + $0x188] sm:$0xff]
  %v71 = vld [vmem:[%s0 + $0x190] sm:$0xff]
  %v72 = vld [vmem:[%s0 + $0x198] sm:$0xff]
  %v73 = vld [vmem:[%s0 + $0x1a0] sm:$0xff]
  %v74 = vld [vmem:[%s0 + $0x1a8] sm:$0xff]
  %v75 = vld [vmem:[%s0 + $0x1b0] sm:$0xff]
  %v76 = vld [vmem:[%s0 + $0x1b8] sm:$0xff]
  %v77 = vld [vmem:[%s0 + $0x1c0] sm:$0xff]
  %v78 = vld [vmem:[%s0 + $0x1c8] sm:$0xff]
  %v79 = vld [vmem:[%s0 + $0x1d0] sm:$0xff]
  %v80 = vld [vmem:[%s0 + $0x1d8] sm:$0xff]
  %v81 = vld [vmem:[%s0 + $0x1e0] sm:$0xff]
  %v82 = vld [vmem:[%s0 + $0x1e8] sm:$0xff]
  %v83 = vld [vmem:[%s0 + $0x1f0] sm:$0xff]
  %v84 = vld [vmem:[%s0 + $0x1f8] sm:$0xff]
  %v85 = vld [vmem:[%s0 + $0x200] sm:$0xff]
  %v86 = vld [vmem:[%s0 + $0x208] sm:$0xff]
  %v87 = vld [vmem:[%s0 + $0x210] sm:$0xff]
  %v88 = vld [vmem:[%s0 + $0x218] sm:$0xff]
  %v89 = vld [vmem:[%s0 + $0x220] sm:$0xff]
  %v90 = vld [vmem:[%s0 + $0x228] sm:$0xff]
  %v91 = vld [vmem:[%s0 + $0x230] sm:$0xff]
  %v92 = vld [vmem:[%s0 + $0x238] sm:$0xff]
  %v93 = vld [vmem:[%s0 + $0x240] sm:$0xff]
  %v94 = vld [vmem:[%s0 + $0x248] sm:$0xff]
  %v95 = vld [vmem:[%s0 + $0x250] sm:$0xff]
  %v96 = vld [vmem:[%s0 + $0x258] sm:$0xff]
  %v97 = vld [vmem:[%s0 + $0x260] sm:$0xff]
  %v98 = vld [vmem:[%s0 + $0x268] sm:$0xff]
  %v99 = vld [vmem:[%s0 + $0x270] sm:$0xff]
  %v100 = vld [vmem:[%s0 + $0x278] sm:$0xff]
  %v101 = vld [vmem:[%s0 + $0x280] sm:$0xff]
  %v102 = vld [vmem:[%s0 + $0x288] sm:$0xff]
  %v103 = vld [vmem:[%s0 + $0x290] sm:$0xff]
  %v104 = vld [vmem:[%s0 + $0x298] sm:$0xff]
  %v105 = vld [vmem:[%s0 + $0x2a0] sm:$0xff]
  %v106 = vld [vmem:[%s0 + $0x2a8] sm:$0xff]
  %v107 = vld [vmem:[%s0 + $0x2b0] sm:$0xff]
  %v108 = vld [vmem:[%s0 + $0x2b8] sm:$0xff]
  %v109 = vld [vmem:[%s0 + $0x2c0] sm:$0xff]
  %v110 = vld [vmem:[%s0 + $0x2c8] sm:$0xff]
  %v111 = vld [vmem:[%s0 + $0x2d0] sm:$0xff]
  %v112 = vld [vmem:[%s0 + $0x2d8] sm:$0xff]
  %v113 = vld [vmem:[%s0 + $0x2e0] sm:$0xff]
  %v114 = vld [vmem:[%s0 + $0x2e8] sm:$0xff]
  %v115 = vld [vmem:[%s0 + $0x2f0] sm:$0xff]
  %v116 = vld [vmem:[%s0 + $0x2f8] sm:$0xff]
  %v117 = vld [vmem:[%s0 + $0x300] sm:$0xff]
  %v118 = vld [vmem:[%s0 + $0x308] sm:$0xff]
  %v119 = vld [vmem:[%s0 + $0x310] sm:$0xff]
  %v120 = vld [vmem:[%s0 + $0x318] sm:$0xff]
  %v121 = vld [vmem:[%s0 + $0x320] sm:$0xff]
  %v122 = vld [vmem:[%s0 + $0x328] sm:$0xff]
  %v123 = vld [vmem:[%s0 + $0x330] sm:$0xff]
  %v124 = vld [vmem:[%s0 + $0x338] sm:$0xff]
  %v125 = vld [vmem:[%s0 + $0x340] sm:$0xff]
  %v126 = vld [vmem:[%s0 + $0x348] sm:$0xff]
  %v127 = vld [vmem:[%s0 + $0x350] sm:$0xff]
  %v128 = vld [vmem:[%s0 + $0x358] sm:$0xff]
  %v129 = vld [vmem:[%s0 + $0x360] sm:$0xff]
  %v130 = vld [vmem:[%s0 + $0x368] sm:$0xff]
  %v131 = vld [vmem:[%s0 + $0x370] sm:$0xff]
  %v132 = vld [vmem:[%s0 + $0x378] sm:$0xff]
  %v133 = vld [vmem:[%s0 + $0x380] sm:$0xff]
  %v134 = vld [vmem:[%s0 + $0x388] sm:$0xff]
  %v135 = vld [vmem:[%s0 + $0x390] sm:$0xff]
  %v136 = vld [vmem:[%s0 + $0x398] sm:$0xff]
  %v137 = vld [vmem:[%s0 + $0x3a0] sm:$0xff]
  %v138 = vld [vmem:[%s0 + $0x3a8] sm:$0xff]
  %v139 = vld [vmem:[%s0 + $0x3b0] sm:$0xff]
  %v140 = vld [vmem:[%s0 + $0x3b8] sm:$0xff]
  %v141 = vld [vmem:[%s0 + $0x3c0] sm:$0xff]
  %v142 = vld [vmem:[%s0 + $0x3c8] sm:$0xff]
  %v143 = vld [vmem:[%s0 + $0x3d0] sm:$0xff]
  %v144 = vld [vmem:[%s0 + $0x3d8] sm:$0xff]
  %v145 = vld [vmem:[%s0 + $0x3e0] sm:$0xff]
  %v146 = vld [vmem:[%s0 + $0x3e8] sm:$0xff]
  %v147 = vld [vmem:[%s0 + $0x3f0] sm:$0xff]
  %v148 = vld [vmem:[%s0 + $0x3f8] sm:$0xff]
  %v149 = vld [vmem:[%s0 + $0x400] sm:$0xff]
  %v150 = vld [vmem:[%s0 + $0x408] sm:$0xff]
  %v151 = vld [vmem:[%s0 + $0x410] sm:$0xff]
  %v152 = vld [vmem:[%s0 + $0x418] sm:$0xff]
  %v153 = vld [vmem:[%s0 + $0x420] sm:$0xff]
  %v154 = vld [vmem:[%s0 + $0x428] sm:$0xff]
  %v155 = vld [vmem:[%s0 + $0x430] sm:$0xff]
  %v156 = vld [vmem:[%s0 + $0x438] sm:$0xff]
  %v157 = vld [vmem:[%s0 + $0x440] sm:$0xff]
  %v158 = vld [vmem:[%s0 + $0x448] sm:$0xff]
  %v159 = vld [vmem:[%s0 + $0x450] sm:$0xff]
  %v160 = vld [vmem:[%s0 + $0x458] sm:$0xff]
  %v161 = vld [vmem:[%s0 + $0x460] sm:$0xff]
  %v162 = vld [vmem:[%s0 + $0x468] sm:$0xff]
  %v163 = vld [vmem:[%s0 + $0x470] sm:$0xff]
  %v164 = vld [vmem:[%s0 + $0x478] sm:$0xff]
  %v165 = vld [vmem:[%s0 + $0x480] sm:$0xff]
  %v166 = vld [vmem:[%s0 + $0x488] sm:$0xff]
  %v167 = vld [vmem:[%s0 + $0x490] sm:$0xff]
  %v168 = vld [vmem:[%s0 + $0x498] sm:$0xff]
  %v169 = vld [vmem:[%s0 + $0x4a0] sm:$0xff]
  %v170 = vld [vmem:[%s0 + $0x4a8] sm:$0xff]
  %v171 = vld [vmem:[%s0 + $0x4b0] sm:$0xff]
  %v172 = vld [vmem:[%s0 + $0x4b8] sm:$0xff]
  %v173 = vld [vmem:[%s0 + $0x4c0] sm:$0xff]
  %v174 = vld [vmem:[%s0 + $0x4c8] sm:$0xff]
  %v175 = vld [vmem:[%s0 + $0x4d0] sm:$0xff]
  %v176 = vld [vmem:[%s0 + $0x4d8] sm:$0xff]
  %v177 = vld [vmem:[%s0 + $0x4e0] sm:$0xff]
  %v178 = vld [vmem:[%s0 + $0x4e8] sm:$0xff]
  %v179 = vld [vmem:[%s0 + $0x4f0] sm:$0xff]
  %v180 = vld [vmem:[%s0 + $0x4f8] sm:$0xff]
  %v181 = vld [vmem:[%s0 + $0x500] sm:$0xff]
  %v182 = vld [vmem:[%s0 + $0x508] sm:$0xff]
  %v183 = vld [vmem:[%s0 + $0x510] sm:$0xff]
  %v184 = vld [vmem:[%s0 + $0x518] sm:$0xff]
  %v185 = vld [vmem:[%s0 + $0x520] sm:$0xff]
  %v186 = vld [vmem:[%s0 + $0x528] sm:$0xff]
  %v187 = vld [vmem:[%s0 + $0x530] sm:$0xff]
  %v188 = vld [vmem:[%s0 + $0x538] sm:$0xff]
  %v189 = vld [vmem:[%s0 + $0x540] sm:$0xff]
  %v190 = vld [vmem:[%s0 + $0x548] sm:$0xff]
  %v191 = vld [vmem:[%s0 + $0x550] sm:$0xff]
  %v192 = vld [vmem:[%s0 + $0x558] sm:$0xff]
  %v193 = vld [vmem:[%s0 + $0x560] sm:$0xff]
  %v194 = vld [vmem:[%s0 + $0x568] sm:$0xff]
  %v195 = vld [vmem:[%s0 + $0x570] sm:$0xff]
  %v196 = vld [vmem:[%s0 + $0x578] sm:$0xff]
  %v197 = vld [vmem:[%s0 + $0x580] sm:$0xff]
  %v198 = vld [vmem:[%s0 + $0x588] sm:$0xff]
  %v199 = vld [vmem:[%s0 + $0x590] sm:$0xff]
  %v200 = vld [vmem:[%s0 + $0x598] sm:$0xff]
  %v201 = vld [vmem:[%s0 + $0x5a0] sm:$0xff]
  %v202 = vld [vmem:[%s0 + $0x5a8] sm:$0xff]
  %v203 = vld [vmem:[%s0 + $0x5b0] sm:$0xff]
  %v204 = vld [vmem:[%s0 + $0x5b8] sm:$0xff]
  %v205 = vld [vmem:[%s0 + $0x5c0] sm:$0xff]
  %v206 = vld [vmem:[%s0 + $0x5c8] sm:$0xff]
  %v207 = vld [vmem:[%s0 + $0x5d0] sm:$0xff]
  %v208 = vld [vmem:[%s0 + $0x5d8] sm:$0xff]
  %v209 = vld [vmem:[%s0 + $0x5e0] sm:$0xff]
  %v210 = vld [vmem:[%s0 + $0x5e8] sm:$0xff]
  %v211 = vld [vmem:[%s0 + $0x5f0] sm:$0xff]
  %v212 = vld [vmem:[%s0 + $0x5f8] sm:$0xff]
  %v213 = vld [vmem:[%s0 + $0x600] sm:$0xff]
  %v214 = vld [vmem:[%s0 + $0x608] sm:$0xff]
  %v215 = vld [vmem:[%s0 + $0x610] sm:$0xff]
  %v216 = vld [vmem:[%s0 + $0x618] sm:$0xff]
  %v217 = vld [vmem:[%s0 + $0x620] sm:$0xff]
  %v218 = vld [vmem:[%s0 + $0x628] sm:$0xff]
  %v219 = vld [vmem:[%s0 + $0x630] sm:$0xff]
  %v220 = vld [vmem:[%s0 + $0x638] sm:$0xff]
  %v221 = vld [vmem:[%s0 + $0x640] sm:$0xff]
  %v222 = vld [vmem:[%s0 + $0x648] sm:$0xff]
  %v223 = vld [vmem:[%s0 + $0x650] sm:$0xff]
  %v224 = vld [vmem:[%s0 + $0x658] sm:$0xff]
  %v225 = vld [vmem:[%s0 + $0x660] sm:$0xff]
  %v226 = vld [vmem:[%s0 + $0x668] sm:$0xff]
  %v227 = vld [vmem:[%s0 + $0x670] sm:$0xff]
  %v228 = vld [vmem:[%s0 + $0x678] sm:$0xff]
  %v229 = vld [vmem:[%s0 + $0x680] sm:$0xff]
  %v230 = vld [vmem:[%s0 + $0x688] sm:$0xff]
  %v231 = vld [vmem:[%s0 + $0x690] sm:$0xff]
  %v232 = vld [vmem:[%s0 + $0x698] sm:$0xff]
  %v233 = vld [vmem:[%s0 + $0x6a0] sm:$0xff]
  %v234 = vld [vmem:[%s0 + $0x6a8] sm:$0xff]
  %v235 = vld [vmem:[%s0 + $0x6b0] sm:$0xff]
  %v236 = vld [vmem:[%s0 + $0x6b8] sm:$0xff]
  %v237 = vld [vmem:[%s0 + $0x6c0] sm:$0xff]
  %v238 = vld [vmem:[%s0 + $0x6c8] sm:$0xff]
  %v239 = vld [vmem:[%s0 + $0x6d0] sm:$0xff]
  %v240 = vld [vmem:[%s0 + $0x6d8] sm:$0xff]
  %v241 = vld [vmem:[%s0 + $0x6e0] sm:$0xff]
  %v242 = vld [vmem:[%s0 + $0x6e8] sm:$0xff]
  %v243 = vld [vmem:[%s0 + $0x6f0] sm:$0xff]
  %v244 = vld [vmem:[%s0 + $0x6f8] sm:$0xff]
  %v245 = vld [vmem:[%s0 + $0x700] sm:$0xff]
  %v246 = vld [vmem:[%s0 + $0x708] sm:$0xff]
  %v247 = vld [vmem:[%s0 + $0x710] sm:$0xff]
  %v248 = vld [vmem:[%s0 + $0x718] sm:$0xff]
  %v249 = vld [vmem:[%s0 + $0x720] sm:$0xff]
  %v250 = vld [vmem:[%s0 + $0x728] sm:$0xff]
  %v251 = vld [vmem:[%s0 + $0x730] sm:$0xff]
  %v252 = vld [vmem:[%s0 + $0x738] sm:$0xff]
  %v253 = vld [vmem:[%s0 + $0x740] sm:$0xff]
  %v254 = vld [vmem:[%s0 + $0x748] sm:$0xff]
  %v255 = vld [vmem:[%s0 + $0x750] sm:$0xff]
  %v256 = vld [vmem:[%s0 + $0x758] sm:$0xff]
  %v257 = vld [vmem:[%s0 + $0x760] sm:$0xff]
  %v258 = vld [vmem:[%s0 + $0x768] sm:$0xff]
  %v259 = vld [vmem:[%s0 + $0x770] sm:$0xff]
  %v260 = vld [vmem:[%s0 + $0x778] sm:$0xff]
  %v261 = vld [vmem:[%s0 + $0x780] sm:$0xff]
  %v262 = vld [vmem:[%s0 + $0x788] sm:$0xff]
  %v263 = vld [vmem:[%s0 + $0x790] sm:$0xff]
  %v264 = vld [vmem:[%s0 + $0x798] sm:$0xff]
  %v265 = vld [vmem:[%s0 + $0x7a0] sm:$0xff]
  %v266 = vld [vmem:[%s0 + $0x7a8] sm:$0xff]
  %v267 = vld [vmem:[%s0 + $0x7b0] sm:$0xff]
  %v268 = vld [vmem:[%s0 + $0x7b8] sm:$0xff]
  %v269 = vld [vmem:[%s0 + $0x7c0] sm:$0xff]
  %v270 = vld [vmem:[%s0 + $0x7c8] sm:$0xff]
  %v271 = vld [vmem:[%s0 + $0x7d0] sm:$0xff]
  %v272 = vld [vmem:[%s0 + $0x7d8] sm:$0xff]
  %v273 = vld [vmem:[%s0 + $0x7e0] sm:$0xff]
  %v274 = vld [vmem:[%s0 + $0x7e8] sm:$0xff]
  %v275 = vld [vmem:[%s0 + $0x7f0] sm:$0xff]
  %v276 = vld [vmem:[%s0 + $0x7f8] sm:$0xff]
  %v277 = vld [vmem:[%s0 + $0x800] sm:$0xff]
  %v278 = vld [vmem:[%s0 + $0x808] sm:$0xff]
  %v279 = vld [vmem:[%s0 + $0x810] sm:$0xff]
  %v280 = vld [vmem:[%s0 + $0x818] sm:$0xff]
  %v281 = vld [vmem:[%s0 + $0x820] sm:$0xff]
  %v282 = vld [vmem:[%s0 + $0x828] sm:$0xff]
  %v283 = vld [vmem:[%s0 + $0x830] sm:$0xff]
  %v284 = vld [vmem:[%s0 + $0x838] sm:$0xff]
  %v285 = vld [vmem:[%s0 + $0x840] sm:$0xff]
  %v286 = vld [vmem:[%s0 + $0x848] sm:$0xff]
  %v287 = vld [vmem:[%s0 + $0x850] sm:$0xff]
  %v288 = vld [vmem:[%s0 + $0x858] sm:$0xff]
  %v289 = vld [vmem:[%s0 + $0x860] sm:$0xff]
  %v290 = vld [vmem:[%s0 + $0x868] sm:$0xff]
  %v291 = vld [vmem:[%s0 + $0x870] sm:$0xff]
  %v292 = vld [vmem:[%s0 + $0x878] sm:$0xff]
  %v293 = vld [vmem:[%s0 + $0x880] sm:$0xff]
  %v294 = vld [vmem:[%s0 + $0x888] sm:$0xff]
  %v295 = vld [vmem:[%s0 + $0x890] sm:$0xff]
  %v296 = vld [vmem:[%s0 + $0x898] sm:$0xff]
  %v297 = vld [vmem:[%s0 + $0x8a0] sm:$0xff]
  %v298 = vld [vmem:[%s0 + $0x8a8] sm:$0xff]
  %v299 = vld [vmem:[%s0 + $0x8b0] sm:$0xff]
  %v300 = vld [vmem:[%s0 + $0x8b8] sm:$0xff]
  %v301 = vld [vmem:[%s0 + $0x8c0] sm:$0xff]
  %v302 = vld [vmem:[%s0 + $0x8c8] sm:$0xff]
  %v303 = vld [vmem:[%s0 + $0x8d0] sm:$0xff]
  %v304 = vld [vmem:[%s0 + $0x8d8] sm:$0xff]
  %v305 = vld [vmem:[%s0 + $0x8e0] sm:$0xff]
  %v306 = vld [vmem:[%s0 + $0x8e8] sm:$0xff]
  %v307 = vld [vmem:[%s0 + $0x8f0] sm:$0xff]
  %v308 = vld [vmem:[%s0 + $0x8f8] sm:$0xff]
  %v309 = vld [vmem:[%s0 + $0x900] sm:$0xff]
  %v310 = vld [vmem:[%s0 + $0x908] sm:$0xff]
  %v311 = vld [vmem:[%s0 + $0x910] sm:$0xff]
  %v312 = vld [vmem:[%s0 + $0x918] sm:$0xff]
  %v313 = vld [vmem:[%s0 + $0x920] sm:$0xff]
  %v314 = vld [vmem:[%s0 + $0x928] sm:$0xff]
  %v315 = vld [vmem:[%s0 + $0x930] sm:$0xff]
  %v316 = vld [vmem:[%s0 + $0x938] sm:$0xff]
  %v317 = vld [vmem:[%s0 + $0x940] sm:$0xff]
  %v318 = vld [vmem:[%s0 + $0x948] sm:$0xff]
  %v319 = vld [vmem:[%s0 + $0x950] sm:$0xff]
  %v320 = vld [vmem:[%s0 + $0x958] sm:$0xff]
  %v321 = vld [vmem:[%s0 + $0x960] sm:$0xff]
  %v322 = vld [vmem:[%s0 + $0x968] sm:$0xff]
  %v323 = vld [vmem:[%s0 + $0x970] sm:$0xff]
  %v324 = vld [vmem:[%s0 + $0x978] sm:$0xff]
  %v325 = vld [vmem:[%s0 + $0x980] sm:$0xff]
  %v326 = vld [vmem:[%s0 + $0x988] sm:$0xff]
  %v327 = vld [vmem:[%s0 + $0x990] sm:$0xff]
  %v328 = vld [vmem:[%s0 + $0x998] sm:$0xff]
  %v329 = vld [vmem:[%s0 + $0x9a0] sm:$0xff]
  %v330 = vld [vmem:[%s0 + $0x9a8] sm:$0xff]
  %v331 = vld [vmem:[%s0 + $0x9b0] sm:$0xff]
  %v332 = vld [vmem:[%s0 + $0x9b8] sm:$0xff]
  %v333 = vld [vmem:[%s0 + $0x9c0] sm:$0xff]
  %v334 = vld [vmem:[%s0 + $0x9c8] sm:$0xff]
  %v335 = vld [vmem:[%s0 + $0x9d0] sm:$0xff]
  %v336 = vld [vmem:[%s0 + $0x9d8] sm:$0xff]
  %v337 = vld [vmem:[%s0 + $0x9e0] sm:$0xff]
  %v338 = vld [vmem:[%s0 + $0x9e8] sm:$0xff]
  %v339 = vld [vmem:[%s0 + $0x9f0] sm:$0xff]
  %v340 = vld [vmem:[%s0 + $0x9f8] sm:$0xff]
  %v341 = vld [vmem:[%s0 + $0xa00] sm:$0xff]
  %v342 = vld [vmem:[%s0 + $0xa08] sm:$0xff]
  %v343 = vld [vmem:[%s0 + $0xa10] sm:$0xff]
  %v344 = vld [vmem:[%s0 + $0xa18] sm:$0xff]
  %v345 = vld [vmem:[%s0 + $0xa20] sm:$0xff]
  %v346 = vld [vmem:[%s0 + $0xa28] sm:$0xff]
  %v347 = vld [vmem:[%s0 + $0xa30] sm:$0xff]
  %v348 = vld [vmem:[%s0 + $0xa38] sm:$0xff]
  %v349 = vld [vmem:[%s0 + $0xa40] sm:$0xff]
  %v350 = vld [vmem:[%s0 + $0xa48] sm:$0xff]
  %v351 = vld [vmem:[%s0 + $0xa50] sm:$0xff]
  %v352 = vld [vmem:[%s0 + $0xa58] sm:$0xff]
  %v353 = vld [vmem:[%s0 + $0xa60] sm:$0xff]
  %v354 = vld [vmem:[%s0 + $0xa68] sm:$0xff]
  %v355 = vld [vmem:[%s0 + $0xa70] sm:$0xff]
  %v356 = vld [vmem:[%s0 + $0xa78] sm:$0xff]
  %v357 = vld [vmem:[%s0 + $0xa80] sm:$0xff]
  %v358 = vld [vmem:[%s0 + $0xa88] sm:$0xff]
  %v359 = vld [vmem:[%s0 + $0xa90] sm:$0xff]
  %v360 = vld [vmem:[%s0 + $0xa98] sm:$0xff]
  %v361 = vld [vmem:[%s0 + $0xaa0] sm:$0xff]
  %v362 = vld [vmem:[%s0 + $0xaa8] sm:$0xff]
  %v363 = vld [vmem:[%s0 + $0xab0] sm:$0xff]
  %v364 = vld [vmem:[%s0 + $0xab8] sm:$0xff]
  %v365 = vld [vmem:[%s0 + $0xac0] sm:$0xff]
  %v366 = vld [vmem:[%s0 + $0xac8] sm:$0xff]
  %v367 = vld [vmem:[%s0 + $0xad0] sm:$0xff]
  %v368 = vld [vmem:[%s0 + $0xad8] sm:$0xff]
  %v369 = vld [vmem:[%s0 + $0xae0] sm:$0xff]
  %v370 = vld [vmem:[%s0 + $0xae8] sm:$0xff]
  %v371 = vld [vmem:[%s0 + $0xaf0] sm:$0xff]
  %v372 = vld [vmem:[%s0 + $0xaf8] sm:$0xff]
  %v373 = vld [vmem:[%s0 + $0xb00] sm:$0xff]
  %v374 = vld [vmem:[%s0 + $0xb08] sm:$0xff]
  %v375 = vld [vmem:[%s0 + $0xb10] sm:$0xff]
  %v376 = vld [vmem:[%s0 + $0xb18] sm:$0xff]
  %v377 = vld [vmem:[%s0 + $0xb20] sm:$0xff]
  %v378 = vld [vmem:[%s0 + $0xb28] sm:$0xff]
  %v379 = vld [vmem:[%s0 + $0xb30] sm:$0xff]
  %v380 = vld [vmem:[%s0 + $0xb38] sm:$0xff]
  %v381 = vld [vmem:[%s0 + $0xb40] sm:$0xff]
  %v382 = vld [vmem:[%s0 + $0xb48] sm:$0xff]
  %v383 = vld [vmem:[%s0 + $0xb50] sm:$0xff]
  %v384 = vld [vmem:[%s0 + $0xb58] sm:$0xff]
  %v385 = vld [vmem:[%s0 + $0xb60] sm:$0xff]
  %v386 = vld [vmem:[%s0 + $0xb68] sm:$0xff]
  %v387 = vld [vmem:[%s0 + $0xb70] sm:$0xff]
  %v388 = vld [vmem:[%s0 + $0xb78] sm:$0xff]
  %v389 = vld [vmem:[%s0 + $0xb80] sm:$0xff]
  %v390 = vld [vmem:[%s0 + $0xb88] sm:$0xff]
  %v391 = vld [vmem:[%s0 + $0xb90] sm:$0xff]
  %v392 = vld [vmem:[%s0 + $0xb98] sm:$0xff]
  %v393 = vld [vmem:[%s0 + $0xba0] sm:$0xff]
  %v394 = vld [vmem:[%s0 + $0xba8] sm:$0xff]
  %v395 = vld [vmem:[%s0 + $0xbb0] sm:$0xff]
  %v396 = vld [vmem:[%s0 + $0xbb8] sm:$0xff]
  %v397 = vld [vmem:[%s0 + $0xbc0] sm:$0xff]
  %v398 = vld [vmem:[%s0 + $0xbc8] sm:$0xff]
  %v399 = vld [vmem:[%s0 + $0xbd0] sm:$0xff]
  %v400 = vld [vmem:[%s0 + $0xbd8] sm:$0xff]
  %v401 = vld [vmem:[%s0 + $0xbe0] sm:$0xff]
  %v402 = vld [vmem:[%s0 + $0xbe8] sm:$0xff]
  %v403 = vld [vmem:[%s0 + $0xbf0] sm:$0xff]
  %v404 = vld [vmem:[%s0 + $0xbf8] sm:$0xff]
  %v405 = vpack.c.bf16 %v33, %v21
  %v406 = vpack.c.bf16 %v34, %v22
  %v407 = vpack.c.bf16 %v35, %v23
  %v408 = vpack.c.bf16 %v36, %v24
  %v409 = vpack.c.bf16 %v37, %v25
  %v410 = vpack.c.bf16 %v38, %v26
  %v411 = vpack.c.bf16 %v39, %v27
  %v412 = vpack.c.bf16 %v40, %v28
  %v413 = vpack.c.bf16 %v41, %v29
  %v414 = vpack.c.bf16 %v42, %v30
  %v415 = vpack.c.bf16 %v43, %v31
  %v416 = vpack.c.bf16 %v44, %v32
  %v417 = vpack.c.bf16 %v57, %v45
  %v418 = vpack.c.bf16 %v58, %v46
  %v419 = vpack.c.bf16 %v59, %v47
  %v420 = vpack.c.bf16 %v60, %v48
  %v421 = vpack.c.bf16 %v61, %v49
  %v422 = vpack.c.bf16 %v62, %v50
  %v423 = vpack.c.bf16 %v63, %v51
  %v424 = vpack.c.bf16 %v64, %v52
  %v425 = vpack.c.bf16 %v65, %v53
  %v426 = vpack.c.bf16 %v66, %v54
  %v427 = vpack.c.bf16 %v67, %v55
  %v428 = vpack.c.bf16 %v68, %v56
  %v429 = vpack.c.bf16 %v81, %v69
  %v430 = vpack.c.bf16 %v82, %v70
  %v431 = vpack.c.bf16 %v83, %v71
  %v432 = vpack.c.bf16 %v84, %v72
  %v433 = vpack.c.bf16 %v85, %v73
  %v434 = vpack.c.bf16 %v86, %v74
  %v435 = vpack.c.bf16 %v87, %v75
  %v436 = vpack.c.bf16 %v88, %v76
  %v437 = vpack.c.bf16 %v89, %v77
  %v438 = vpack.c.bf16 %v90, %v78
  %v439 = vpack.c.bf16 %v91, %v79
  %v440 = vpack.c.bf16 %v92, %v80
  %v441 = vpack.c.bf16 %v105, %v93
  %v442 = vpack.c.bf16 %v106, %v94
  %v443 = vpack.c.bf16 %v107, %v95
  %v444 = vpack.c.bf16 %v108, %v96
  %v445 = vpack.c.bf16 %v109, %v97
  %v446 = vpack.c.bf16 %v110, %v98
  %v447 = vpack.c.bf16 %v111, %v99
  %v448 = vpack.c.bf16 %v112, %v100
  %v449 = vpack.c.bf16 %v113, %v101
  %v450 = vpack.c.bf16 %v114, %v102
  %v451 = vpack.c.bf16 %v115, %v103
  %v452 = vpack.c.bf16 %v116, %v104
  %v453 = vpack.c.bf16 %v129, %v117
  %v454 = vpack.c.bf16 %v130, %v118
  %v455 = vpack.c.bf16 %v131, %v119
  %v456 = vpack.c.bf16 %v132, %v120
  %v457 = vpack.c.bf16 %v133, %v121
  %v458 = vpack.c.bf16 %v134, %v122
  %v459 = vpack.c.bf16 %v135, %v123
  %v460 = vpack.c.bf16 %v136, %v124
  %v461 = vpack.c.bf16 %v137, %v125
  %v462 = vpack.c.bf16 %v138, %v126
  %v463 = vpack.c.bf16 %v139, %v127
  %v464 = vpack.c.bf16 %v140, %v128
  %v465 = vpack.c.bf16 %v153, %v141
  %v466 = vpack.c.bf16 %v154, %v142
  %v467 = vpack.c.bf16 %v155, %v143
  %v468 = vpack.c.bf16 %v156, %v144
  %v469 = vpack.c.bf16 %v157, %v145
  %v470 = vpack.c.bf16 %v158, %v146
  %v471 = vpack.c.bf16 %v159, %v147
  %v472 = vpack.c.bf16 %v160, %v148
  %v473 = vpack.c.bf16 %v161, %v149
  %v474 = vpack.c.bf16 %v162, %v150
  %v475 = vpack.c.bf16 %v163, %v151
  %v476 = vpack.c.bf16 %v164, %v152
  %v477 = vpack.c.bf16 %v177, %v165
  %v478 = vpack.c.bf16 %v178, %v166
  %v479 = vpack.c.bf16 %v179, %v167
  %v480 = vpack.c.bf16 %v180, %v168
  %v481 = vpack.c.bf16 %v181, %v169
  %v482 = vpack.c.bf16 %v182, %v170
  %v483 = vpack.c.bf16 %v183, %v171
  %v484 = vpack.c.bf16 %v184, %v172
  %v485 = vpack.c.bf16 %v185, %v173
  %v486 = vpack.c.bf16 %v186, %v174
  %v487 = vpack.c.bf16 %v187, %v175
  %v488 = vpack.c.bf16 %v188, %v176
  %v489 = vpack.c.bf16 %v201, %v189
  %v490 = vpack.c.bf16 %v202, %v190
  %v491 = vpack.c.bf16 %v203, %v191
  %v492 = vpack.c.bf16 %v204, %v192
  %v493 = vpack.c.bf16 %v205, %v193
  %v494 = vpack.c.bf16 %v206, %v194
  %v495 = vpack.c.bf16 %v207, %v195
  %v496 = vpack.c.bf16 %v208, %v196
  %v497 = vpack.c.bf16 %v209, %v197
  %v498 = vpack.c.bf16 %v210, %v198
  %v499 = vpack.c.bf16 %v211, %v199
  %v500 = vpack.c.bf16 %v212, %v200
  %v501 = vpack.c.bf16 %v225, %v213
  %v502 = vpack.c.bf16 %v226, %v214
  %v503 = vpack.c.bf16 %v227, %v215
  %v504 = vpack.c.bf16 %v228, %v216
  %v505 = vpack.c.bf16 %v229, %v217
  %v506 = vpack.c.bf16 %v230, %v218
  %v507 = vpack.c.bf16 %v231, %v219
  %v508 = vpack.c.bf16 %v232, %v220
  %v509 = vpack.c.bf16 %v233, %v221
  %v510 = vpack.c.bf16 %v234, %v222
  %v511 = vpack.c.bf16 %v235, %v223
  %v512 = vpack.c.bf16 %v236, %v224
  %v513 = vpack.c.bf16 %v249, %v237
  %v514 = vpack.c.bf16 %v250, %v238
  %v515 = vpack.c.bf16 %v251, %v239
  %v516 = vpack.c.bf16 %v252, %v240
  %v517 = vpack.c.bf16 %v253, %v241
  %v518 = vpack.c.bf16 %v254, %v242
  %v519 = vpack.c.bf16 %v255, %v243
  %v520 = vpack.c.bf16 %v256, %v244
  %v521 = vpack.c.bf16 %v257, %v245
  %v522 = vpack.c.bf16 %v258, %v246
  %v523 = vpack.c.bf16 %v259, %v247
  %v524 = vpack.c.bf16 %v260, %v248
  %v525 = vpack.c.bf16 %v273, %v261
  %v526 = vpack.c.bf16 %v274, %v262
  %v527 = vpack.c.bf16 %v275, %v263
  %v528 = vpack.c.bf16 %v276, %v264
  %v529 = vpack.c.bf16 %v277, %v265
  %v530 = vpack.c.bf16 %v278, %v266
  %v531 = vpack.c.bf16 %v279, %v267
  %v532 = vpack.c.bf16 %v280, %v268
  %v533 = vpack.c.bf16 %v281, %v269
  %v534 = vpack.c.bf16 %v282, %v270
  %v535 = vpack.c.bf16 %v283, %v271
  %v536 = vpack.c.bf16 %v284, %v272
  %v537 = vpack.c.bf16 %v297, %v285
  %v538 = vpack.c.bf16 %v298, %v286
  %v539 = vpack.c.bf16 %v299, %v287
  %v540 = vpack.c.bf16 %v300, %v288
  %v541 = vpack.c.bf16 %v301, %v289
  %v542 = vpack.c.bf16 %v302, %v290
  %v543 = vpack.c.bf16 %v303, %v291
  %v544 = vpack.c.bf16 %v304, %v292
  %v545 = vpack.c.bf16 %v305, %v293
  %v546 = vpack.c.bf16 %v306, %v294
  %v547 = vpack.c.bf16 %v307, %v295
  %v548 = vpack.c.bf16 %v308, %v296
  %v549 = vpack.c.bf16 %v321, %v309
  %v550 = vpack.c.bf16 %v322, %v310
  %v551 = vpack.c.bf16 %v323, %v311
  %v552 = vpack.c.bf16 %v324, %v312
  %v553 = vpack.c.bf16 %v325, %v313
  %v554 = vpack.c.bf16 %v326, %v314
  %v555 = vpack.c.bf16 %v327, %v315
  %v556 = vpack.c.bf16 %v328, %v316
  %v557 = vpack.c.bf16 %v329, %v317
  %v558 = vpack.c.bf16 %v330, %v318
  %v559 = vpack.c.bf16 %v331, %v319
  %v560 = vpack.c.bf16 %v332, %v320
  %v561 = vpack.c.bf16 %v345, %v333
  %v562 = vpack.c.bf16 %v346, %v334
  %v563 = vpack.c.bf16 %v347, %v335
  %v564 = vpack.c.bf16 %v348, %v336
  %v565 = vpack.c.bf16 %v349, %v337
  %v566 = vpack.c.bf16 %v350, %v338
  %v567 = vpack.c.bf16 %v351, %v339
  %v568 = vpack.c.bf16 %v352, %v340
  %v569 = vpack.c.bf16 %v353, %v341
  %v570 = vpack.c.bf16 %v354, %v342
  %v571 = vpack.c.bf16 %v355, %v343
  %v572 = vpack.c.bf16 %v356, %v344
  %v573 = vpack.c.bf16 %v369, %v357
  %v574 = vpack.c.bf16 %v370, %v358
  %v575 = vpack.c.bf16 %v371, %v359
  %v576 = vpack.c.bf16 %v372, %v360
  %v577 = vpack.c.bf16 %v373, %v361
  %v578 = vpack.c.bf16 %v374, %v362
  %v579 = vpack.c.bf16 %v375, %v363
  %v580 = vpack.c.bf16 %v376, %v364
  %v581 = vpack.c.bf16 %v377, %v365
  %v582 = vpack.c.bf16 %v378, %v366
  %v583 = vpack.c.bf16 %v379, %v367
  %v584 = vpack.c.bf16 %v380, %v368
  %v585 = vpack.c.bf16 %v393, %v381
  %v586 = vpack.c.bf16 %v394, %v382
  %v587 = vpack.c.bf16 %v395, %v383
  %v588 = vpack.c.bf16 %v396, %v384
  %v589 = vpack.c.bf16 %v397, %v385
  %v590 = vpack.c.bf16 %v398, %v386
  %v591 = vpack.c.bf16 %v399, %v387
  %v592 = vpack.c.bf16 %v400, %v388
  %v593 = vpack.c.bf16 %v401, %v389
  %v594 = vpack.c.bf16 %v402, %v390
  %v595 = vpack.c.bf16 %v403, %v391
  %v596 = vpack.c.bf16 %v404, %v392
  %v597 = vld [vmem:[%s1] sm:$0xf]
  %v598 = vld [vmem:[%s1 + $0x4] sm:$0xf]
  %v599 = vld [vmem:[%s1 + $0x8] sm:$0xf]
  %v600 = vld [vmem:[%s1 + $0xc] sm:$0xf]
  %v601 = vld [vmem:[%s1 + $0x10] sm:$0xf]
  %v602 = vld [vmem:[%s1 + $0x14] sm:$0xf]
  %v603 = vld [vmem:[%s1 + $0x18] sm:$0xf]
  %v604 = vld [vmem:[%s1 + $0x1c] sm:$0xf]
  %v605 = vld [vmem:[%s1 + $0x20] sm:$0xf]
  %v606 = vld [vmem:[%s1 + $0x24] sm:$0xf]
  %v607 = vld [vmem:[%s1 + $0x28] sm:$0xf]
  %v608 = vld [vmem:[%s1 + $0x2c] sm:$0xf]
  %v609 = vld [vmem:[%s1 + $0x30] sm:$0xf]
  %v610 = vld [vmem:[%s1 + $0x34] sm:$0xf]
  %v611 = vld [vmem:[%s1 + $0x38] sm:$0xf]
  %v612 = vld [vmem:[%s1 + $0x3c] sm:$0xf]
  %v613 = vld [vmem:[%s1 + $0x40] sm:$0xf]
  %v614 = vld [vmem:[%s1 + $0x44] sm:$0xf]
  %v615 = vld [vmem:[%s1 + $0x48] sm:$0xf]
  %v616 = vld [vmem:[%s1 + $0x4c] sm:$0xf]
  %v617 = vld [vmem:[%s1 + $0x50] sm:$0xf]
  %v618 = vld [vmem:[%s1 + $0x54] sm:$0xf]
  %v619 = vld [vmem:[%s1 + $0x58] sm:$0xf]
  %v620 = vld [vmem:[%s1 + $0x5c] sm:$0xf]
  %v621 = vld [vmem:[%s1 + $0x60] sm:$0xf]
  %v622 = vld [vmem:[%s1 + $0x64] sm:$0xf]
  %v623 = vld [vmem:[%s1 + $0x68] sm:$0xf]
  %v624 = vld [vmem:[%s1 + $0x6c] sm:$0xf]
  %v625 = vld [vmem:[%s1 + $0x70] sm:$0xf]
  %v626 = vld [vmem:[%s1 + $0x74] sm:$0xf]
  %v627 = vld [vmem:[%s1 + $0x78] sm:$0xf]
  %v628 = vld [vmem:[%s1 + $0x7c] sm:$0xf]
  %v629 = vld [vmem:[%s1 + $0x80] sm:$0xf]
  %v630 = vld [vmem:[%s1 + $0x84] sm:$0xf]
  %v631 = vld [vmem:[%s1 + $0x88] sm:$0xf]
  %v632 = vld [vmem:[%s1 + $0x8c] sm:$0xf]
  %v633 = vld [vmem:[%s1 + $0x90] sm:$0xf]
  %v634 = vld [vmem:[%s1 + $0x94] sm:$0xf]
  %v635 = vld [vmem:[%s1 + $0x98] sm:$0xf]
  %v636 = vld [vmem:[%s1 + $0x9c] sm:$0xf]
  %v637 = vld [vmem:[%s1 + $0xa0] sm:$0xf]
  %v638 = vld [vmem:[%s1 + $0xa4] sm:$0xf]
  %v639 = vld [vmem:[%s1 + $0xa8] sm:$0xf]
  %v640 = vld [vmem:[%s1 + $0xac] sm:$0xf]
  %v641 = vld [vmem:[%s1 + $0xb0] sm:$0xf]
  %v642 = vld [vmem:[%s1 + $0xb4] sm:$0xf]
  %v643 = vld [vmem:[%s1 + $0xb8] sm:$0xf]
  %v644 = vld [vmem:[%s1 + $0xbc] sm:$0xf]
  %v645 = vld [vmem:[%s1 + $0xc0] sm:$0xf]
  %v646 = vld [vmem:[%s1 + $0xc4] sm:$0xf]
  %v647 = vld [vmem:[%s1 + $0xc8] sm:$0xf]
  %v648 = vld [vmem:[%s1 + $0xcc] sm:$0xf]
  %v649 = vld [vmem:[%s1 + $0xd0] sm:$0xf]
  %v650 = vld [vmem:[%s1 + $0xd4] sm:$0xf]
  %v651 = vld [vmem:[%s1 + $0xd8] sm:$0xf]
  %v652 = vld [vmem:[%s1 + $0xdc] sm:$0xf]
  %v653 = vld [vmem:[%s1 + $0xe0] sm:$0xf]
  %v654 = vld [vmem:[%s1 + $0xe4] sm:$0xf]
  %v655 = vld [vmem:[%s1 + $0xe8] sm:$0xf]
  %v656 = vld [vmem:[%s1 + $0xec] sm:$0xf]
  %v657 = vld [vmem:[%s1 + $0xf0] sm:$0xf]
  %v658 = vld [vmem:[%s1 + $0xf4] sm:$0xf]
  %v659 = vld [vmem:[%s1 + $0xf8] sm:$0xf]
  %v660 = vld [vmem:[%s1 + $0xfc] sm:$0xf]
  %v661 = vld [vmem:[%s1 + $0x100] sm:$0xf]
  %v662 = vld [vmem:[%s1 + $0x104] sm:$0xf]
  %v663 = vld [vmem:[%s1 + $0x108] sm:$0xf]
  %v664 = vld [vmem:[%s1 + $0x10c] sm:$0xf]
  %v665 = vld [vmem:[%s1 + $0x110] sm:$0xf]
  %v666 = vld [vmem:[%s1 + $0x114] sm:$0xf]
  %v667 = vld [vmem:[%s1 + $0x118] sm:$0xf]
  %v668 = vld [vmem:[%s1 + $0x11c] sm:$0xf]
  %v669 = vld [vmem:[%s1 + $0x120] sm:$0xf]
  %v670 = vld [vmem:[%s1 + $0x124] sm:$0xf]
  %v671 = vld [vmem:[%s1 + $0x128] sm:$0xf]
  %v672 = vld [vmem:[%s1 + $0x12c] sm:$0xf]
  %v673 = vld [vmem:[%s1 + $0x130] sm:$0xf]
  %v674 = vld [vmem:[%s1 + $0x134] sm:$0xf]
  %v675 = vld [vmem:[%s1 + $0x138] sm:$0xf]
  %v676 = vld [vmem:[%s1 + $0x13c] sm:$0xf]
  %v677 = vld [vmem:[%s1 + $0x140] sm:$0xf]
  %v678 = vld [vmem:[%s1 + $0x144] sm:$0xf]
  %v679 = vld [vmem:[%s1 + $0x148] sm:$0xf]
  %v680 = vld [vmem:[%s1 + $0x14c] sm:$0xf]
  %v681 = vld [vmem:[%s1 + $0x150] sm:$0xf]
  %v682 = vld [vmem:[%s1 + $0x154] sm:$0xf]
  %v683 = vld [vmem:[%s1 + $0x158] sm:$0xf]
  %v684 = vld [vmem:[%s1 + $0x15c] sm:$0xf]
  %v685 = vld [vmem:[%s1 + $0x160] sm:$0xf]
  %v686 = vld [vmem:[%s1 + $0x164] sm:$0xf]
  %v687 = vld [vmem:[%s1 + $0x168] sm:$0xf]
  %v688 = vld [vmem:[%s1 + $0x16c] sm:$0xf]
  %v689 = vld [vmem:[%s1 + $0x170] sm:$0xf]
  %v690 = vld [vmem:[%s1 + $0x174] sm:$0xf]
  %v691 = vld [vmem:[%s1 + $0x178] sm:$0xf]
  %v692 = vld [vmem:[%s1 + $0x17c] sm:$0xf]
  %v693 = vld [vmem:[%s1 + $0x180] sm:$0xf]
  %v694 = vld [vmem:[%s1 + $0x184] sm:$0xf]
  %v695 = vld [vmem:[%s1 + $0x188] sm:$0xf]
  %v696 = vld [vmem:[%s1 + $0x18c] sm:$0xf]
  %v697 = vld [vmem:[%s1 + $0x190] sm:$0xf]
  %v698 = vld [vmem:[%s1 + $0x194] sm:$0xf]
  %v699 = vld [vmem:[%s1 + $0x198] sm:$0xf]
  %v700 = vld [vmem:[%s1 + $0x19c] sm:$0xf]
  %v701 = vld [vmem:[%s1 + $0x1a0] sm:$0xf]
  %v702 = vld [vmem:[%s1 + $0x1a4] sm:$0xf]
  %v703 = vld [vmem:[%s1 + $0x1a8] sm:$0xf]
  %v704 = vld [vmem:[%s1 + $0x1ac] sm:$0xf]
  %v705 = vld [vmem:[%s1 + $0x1b0] sm:$0xf]
  %v706 = vld [vmem:[%s1 + $0x1b4] sm:$0xf]
  %v707 = vld [vmem:[%s1 + $0x1b8] sm:$0xf]
  %v708 = vld [vmem:[%s1 + $0x1bc] sm:$0xf]
  %v709 = vld [vmem:[%s1 + $0x1c0] sm:$0xf]
  %v710 = vld [vmem:[%s1 + $0x1c4] sm:$0xf]
  %v711 = vld [vmem:[%s1 + $0x1c8] sm:$0xf]
  %v712 = vld [vmem:[%s1 + $0x1cc] sm:$0xf]
  %v713 = vld [vmem:[%s1 + $0x1d0] sm:$0xf]
  %v714 = vld [vmem:[%s1 + $0x1d4] sm:$0xf]
  %v715 = vld [vmem:[%s1 + $0x1d8] sm:$0xf]
  %v716 = vld [vmem:[%s1 + $0x1dc] sm:$0xf]
  %v717 = vld [vmem:[%s1 + $0x1e0] sm:$0xf]
  %v718 = vld [vmem:[%s1 + $0x1e4] sm:$0xf]
  %v719 = vld [vmem:[%s1 + $0x1e8] sm:$0xf]
  %v720 = vld [vmem:[%s1 + $0x1ec] sm:$0xf]
  %v721 = vld [vmem:[%s1 + $0x1f0] sm:$0xf]
  %v722 = vld [vmem:[%s1 + $0x1f4] sm:$0xf]
  %v723 = vld [vmem:[%s1 + $0x1f8] sm:$0xf]
  %v724 = vld [vmem:[%s1 + $0x1fc] sm:$0xf]
  %v725 = vld [vmem:[%s1 + $0x200] sm:$0xf]
  %v726 = vld [vmem:[%s1 + $0x204] sm:$0xf]
  %v727 = vld [vmem:[%s1 + $0x208] sm:$0xf]
  %v728 = vld [vmem:[%s1 + $0x20c] sm:$0xf]
  %v729 = vld [vmem:[%s1 + $0x210] sm:$0xf]
  %v730 = vld [vmem:[%s1 + $0x214] sm:$0xf]
  %v731 = vld [vmem:[%s1 + $0x218] sm:$0xf]
  %v732 = vld [vmem:[%s1 + $0x21c] sm:$0xf]
  %v733 = vld [vmem:[%s1 + $0x220] sm:$0xf]
  %v734 = vld [vmem:[%s1 + $0x224] sm:$0xf]
  %v735 = vld [vmem:[%s1 + $0x228] sm:$0xf]
  %v736 = vld [vmem:[%s1 + $0x22c] sm:$0xf]
  %v737 = vld [vmem:[%s1 + $0x230] sm:$0xf]
  %v738 = vld [vmem:[%s1 + $0x234] sm:$0xf]
  %v739 = vld [vmem:[%s1 + $0x238] sm:$0xf]
  %v740 = vld [vmem:[%s1 + $0x23c] sm:$0xf]
  %v741 = vld [vmem:[%s1 + $0x240] sm:$0xf]
  %v742 = vld [vmem:[%s1 + $0x244] sm:$0xf]
  %v743 = vld [vmem:[%s1 + $0x248] sm:$0xf]
  %v744 = vld [vmem:[%s1 + $0x24c] sm:$0xf]
  %v745 = vld [vmem:[%s1 + $0x250] sm:$0xf]
  %v746 = vld [vmem:[%s1 + $0x254] sm:$0xf]
  %v747 = vld [vmem:[%s1 + $0x258] sm:$0xf]
  %v748 = vld [vmem:[%s1 + $0x25c] sm:$0xf]
  %v749 = vld [vmem:[%s1 + $0x260] sm:$0xf]
  %v750 = vld [vmem:[%s1 + $0x264] sm:$0xf]
  %v751 = vld [vmem:[%s1 + $0x268] sm:$0xf]
  %v752 = vld [vmem:[%s1 + $0x26c] sm:$0xf]
  %v753 = vld [vmem:[%s1 + $0x270] sm:$0xf]
  %v754 = vld [vmem:[%s1 + $0x274] sm:$0xf]
  %v755 = vld [vmem:[%s1 + $0x278] sm:$0xf]
  %v756 = vld [vmem:[%s1 + $0x27c] sm:$0xf]
  %v757 = vld [vmem:[%s1 + $0x280] sm:$0xf]
  %v758 = vld [vmem:[%s1 + $0x284] sm:$0xf]
  %v759 = vld [vmem:[%s1 + $0x288] sm:$0xf]
  %v760 = vld [vmem:[%s1 + $0x28c] sm:$0xf]
  %v761 = vld [vmem:[%s1 + $0x290] sm:$0xf]
  %v762 = vld [vmem:[%s1 + $0x294] sm:$0xf]
  %v763 = vld [vmem:[%s1 + $0x298] sm:$0xf]
  %v764 = vld [vmem:[%s1 + $0x29c] sm:$0xf]
  %v765 = vld [vmem:[%s1 + $0x2a0] sm:$0xf]
  %v766 = vld [vmem:[%s1 + $0x2a4] sm:$0xf]
  %v767 = vld [vmem:[%s1 + $0x2a8] sm:$0xf]
  %v768 = vld [vmem:[%s1 + $0x2ac] sm:$0xf]
  %v769 = vld [vmem:[%s1 + $0x2b0] sm:$0xf]
  %v770 = vld [vmem:[%s1 + $0x2b4] sm:$0xf]
  %v771 = vld [vmem:[%s1 + $0x2b8] sm:$0xf]
  %v772 = vld [vmem:[%s1 + $0x2bc] sm:$0xf]
  %v773 = vld [vmem:[%s1 + $0x2c0] sm:$0xf]
  %v774 = vld [vmem:[%s1 + $0x2c4] sm:$0xf]
  %v775 = vld [vmem:[%s1 + $0x2c8] sm:$0xf]
  %v776 = vld [vmem:[%s1 + $0x2cc] sm:$0x1]
  %v777 = vld [vmem:[%s2] sm:$0x1]
  %v779 = vlaneseq
  %v780 = vshrl.u32 %v779, 7
  %v781 = vsub.s32 0, %v780
  %v782 = vrot.slane %v777, %v781
  %v964 = vunpack.c.l.b16 %v597
  %v965 = vunpack.c.l.b16 %v598
  %v966 = vunpack.c.l.b16 %v599
  %v967 = vunpack.c.l.b16 %v600
  %v968 = vunpack.c.l.b16 %v601
  %v969 = vunpack.c.l.b16 %v602
  %v970 = vunpack.c.l.b16 %v603
  %v971 = vunpack.c.l.b16 %v604
  %v972 = vunpack.c.l.b16 %v605
  %v973 = vunpack.c.l.b16 %v606
  %v974 = vunpack.c.l.b16 %v607
  %v975 = vunpack.c.l.b16 %v608
  %v976 = vunpack.c.l.b16 %v609
  %v977 = vunpack.c.l.b16 %v610
  %v978 = vunpack.c.l.b16 %v611
  %v979 = vunpack.c.l.b16 %v612
  %v980 = vunpack.c.l.b16 %v613
  %v981 = vunpack.c.l.b16 %v614
  %v982 = vunpack.c.l.b16 %v615
  %v983 = vunpack.c.l.b16 %v616
  %v984 = vunpack.c.l.b16 %v617
  %v985 = vunpack.c.l.b16 %v618
  %v986 = vunpack.c.l.b16 %v619
  %v987 = vunpack.c.l.b16 %v620
  %v988 = vunpack.c.l.b16 %v621
  %v989 = vunpack.c.l.b16 %v622
  %v990 = vunpack.c.l.b16 %v623
  %v991 = vunpack.c.l.b16 %v624
  %v992 = vunpack.c.l.b16 %v625
  %v993 = vunpack.c.l.b16 %v626
  %v994 = vunpack.c.l.b16 %v627
  %v995 = vunpack.c.l.b16 %v628
  %v996 = vunpack.c.l.b16 %v629
  %v997 = vunpack.c.l.b16 %v630
  %v998 = vunpack.c.l.b16 %v631
  %v999 = vunpack.c.l.b16 %v632
  %v1000 = vunpack.c.l.b16 %v633
  %v1001 = vunpack.c.l.b16 %v634
  %v1002 = vunpack.c.l.b16 %v635
  %v1003 = vunpack.c.l.b16 %v636
  %v1004 = vunpack.c.l.b16 %v637
  %v1005 = vunpack.c.l.b16 %v638
  %v1006 = vunpack.c.l.b16 %v639
  %v1007 = vunpack.c.l.b16 %v640
  %v1008 = vunpack.c.l.b16 %v641
  %v1009 = vunpack.c.l.b16 %v642
  %v1010 = vunpack.c.l.b16 %v643
  %v1011 = vunpack.c.l.b16 %v644
  %v1012 = vunpack.c.l.b16 %v645
  %v1013 = vunpack.c.l.b16 %v646
  %v1014 = vunpack.c.l.b16 %v647
  %v1015 = vunpack.c.l.b16 %v648
  %v1016 = vunpack.c.l.b16 %v649
  %v1017 = vunpack.c.l.b16 %v650
  %v1018 = vunpack.c.l.b16 %v651
  %v1019 = vunpack.c.l.b16 %v652
  %v1020 = vunpack.c.l.b16 %v653
  %v1021 = vunpack.c.l.b16 %v654
  %v1022 = vunpack.c.l.b16 %v655
  %v1023 = vunpack.c.l.b16 %v656
  %v1024 = vunpack.c.l.b16 %v657
  %v1025 = vunpack.c.l.b16 %v658
  %v1026 = vunpack.c.l.b16 %v659
  %v1027 = vunpack.c.l.b16 %v660
  %v1028 = vunpack.c.l.b16 %v661
  %v1029 = vunpack.c.l.b16 %v662
  %v1030 = vunpack.c.l.b16 %v663
  %v1031 = vunpack.c.l.b16 %v664
  %v1032 = vunpack.c.l.b16 %v665
  %v1033 = vunpack.c.l.b16 %v666
  %v1034 = vunpack.c.l.b16 %v667
  %v1035 = vunpack.c.l.b16 %v668
  %v1036 = vunpack.c.l.b16 %v669
  %v1037 = vunpack.c.l.b16 %v670
  %v1038 = vunpack.c.l.b16 %v671
  %v1039 = vunpack.c.l.b16 %v672
  %v1040 = vunpack.c.l.b16 %v673
  %v1041 = vunpack.c.l.b16 %v674
  %v1042 = vunpack.c.l.b16 %v675
  %v1043 = vunpack.c.l.b16 %v676
  %v1044 = vunpack.c.l.b16 %v677
  %v1045 = vunpack.c.l.b16 %v678
  %v1046 = vunpack.c.l.b16 %v679
  %v1047 = vunpack.c.l.b16 %v680
  %v1048 = vunpack.c.l.b16 %v681
  %v1049 = vunpack.c.l.b16 %v682
  %v1050 = vunpack.c.l.b16 %v683
  %v1051 = vunpack.c.l.b16 %v684
  %v1052 = vunpack.c.l.b16 %v685
  %v1053 = vunpack.c.l.b16 %v686
  %v1054 = vunpack.c.l.b16 %v687
  %v1055 = vunpack.c.l.b16 %v688
  %v1056 = vunpack.c.l.b16 %v689
  %v1057 = vunpack.c.l.b16 %v690
  %v1058 = vunpack.c.l.b16 %v691
  %v1059 = vunpack.c.l.b16 %v692
  %v1060 = vunpack.c.l.b16 %v693
  %v1061 = vunpack.c.l.b16 %v694
  %v1062 = vunpack.c.l.b16 %v695
  %v1063 = vunpack.c.l.b16 %v696
  %v1064 = vunpack.c.l.b16 %v697
  %v1065 = vunpack.c.l.b16 %v698
  %v1066 = vunpack.c.l.b16 %v699
  %v1067 = vunpack.c.l.b16 %v700
  %v1068 = vunpack.c.l.b16 %v701
  %v1069 = vunpack.c.l.b16 %v702
  %v1070 = vunpack.c.l.b16 %v703
  %v1071 = vunpack.c.l.b16 %v704
  %v1072 = vunpack.c.l.b16 %v705
  %v1073 = vunpack.c.l.b16 %v706
  %v1074 = vunpack.c.l.b16 %v707
  %v1075 = vunpack.c.l.b16 %v708
  %v1076 = vunpack.c.l.b16 %v709
  %v1077 = vunpack.c.l.b16 %v710
  %v1078 = vunpack.c.l.b16 %v711
  %v1079 = vunpack.c.l.b16 %v712
  %v1080 = vunpack.c.l.b16 %v713
  %v1081 = vunpack.c.l.b16 %v714
  %v1082 = vunpack.c.l.b16 %v715
  %v1083 = vunpack.c.l.b16 %v716
  %v1084 = vunpack.c.l.b16 %v717
  %v1085 = vunpack.c.l.b16 %v718
  %v1086 = vunpack.c.l.b16 %v719
  %v1087 = vunpack.c.l.b16 %v720
  %v1088 = vunpack.c.l.b16 %v721
  %v1089 = vunpack.c.l.b16 %v722
  %v1090 = vunpack.c.l.b16 %v723
  %v1091 = vunpack.c.l.b16 %v724
  %v1092 = vunpack.c.l.b16 %v725
  %v1093 = vunpack.c.l.b16 %v726
  %v1094 = vunpack.c.l.b16 %v727
  %v1095 = vunpack.c.l.b16 %v728
  %v1096 = vunpack.c.l.b16 %v729
  %v1097 = vunpack.c.l.b16 %v730
  %v1098 = vunpack.c.l.b16 %v731
  %v1099 = vunpack.c.l.b16 %v732
  %v1100 = vunpack.c.l.b16 %v733
  %v1101 = vunpack.c.l.b16 %v734
  %v1102 = vunpack.c.l.b16 %v735
  %v1103 = vunpack.c.l.b16 %v736
  %v1104 = vunpack.c.l.b16 %v737
  %v1105 = vunpack.c.l.b16 %v738
  %v1106 = vunpack.c.l.b16 %v739
  %v1107 = vunpack.c.l.b16 %v740
  %v1108 = vunpack.c.l.b16 %v741
  %v1109 = vunpack.c.l.b16 %v742
  %v1110 = vunpack.c.l.b16 %v743
  %v1111 = vunpack.c.l.b16 %v744
  %v1112 = vunpack.c.l.b16 %v745
  %v1113 = vunpack.c.l.b16 %v746
  %v1114 = vunpack.c.l.b16 %v747
  %v1115 = vunpack.c.l.b16 %v748
  %v1116 = vunpack.c.l.b16 %v749
  %v1117 = vunpack.c.l.b16 %v750
  %v1118 = vunpack.c.l.b16 %v751
  %v1119 = vunpack.c.l.b16 %v752
  %v1120 = vunpack.c.l.b16 %v753
  %v1121 = vunpack.c.l.b16 %v754
  %v1122 = vunpack.c.l.b16 %v755
  %v1123 = vunpack.c.l.b16 %v756
  %v1124 = vunpack.c.l.b16 %v757
  %v1125 = vunpack.c.l.b16 %v758
  %v1126 = vunpack.c.l.b16 %v759
  %v1127 = vunpack.c.l.b16 %v760
  %v1128 = vunpack.c.l.b16 %v761
  %v1129 = vunpack.c.l.b16 %v762
  %v1130 = vunpack.c.l.b16 %v763
  %v1131 = vunpack.c.l.b16 %v764
  %v1132 = vunpack.c.l.b16 %v765
  %v1133 = vunpack.c.l.b16 %v766
  %v1134 = vunpack.c.l.b16 %v767
  %v1135 = vunpack.c.l.b16 %v768
  %v1136 = vunpack.c.l.b16 %v769
  %v1137 = vunpack.c.l.b16 %v770
  %v1138 = vunpack.c.l.b16 %v771
  %v1139 = vunpack.c.l.b16 %v772
  %v1140 = vunpack.c.l.b16 %v773
  %v1141 = vunpack.c.l.b16 %v774
  %v1142 = vunpack.c.l.b16 %v775
  %v1143 = vunpack.c.l.b16 %v776
  %v1144 = vpack.c.b16 %v965, %v964
  %v1145 = vpack.c.b16 %v967, %v966
  %v1146 = vpack.c.b16 %v969, %v968
  %v1147 = vpack.c.b16 %v971, %v970
  %v1148 = vpack.c.b16 %v973, %v972
  %v1149 = vpack.c.b16 %v975, %v974
  %v1150 = vpack.c.b16 %v977, %v976
  %v1151 = vpack.c.b16 %v979, %v978
  %v1152 = vpack.c.b16 %v981, %v980
  %v1153 = vpack.c.b16 %v983, %v982
  %v1154 = vpack.c.b16 %v985, %v984
  %v1155 = vpack.c.b16 %v987, %v986
  %v1156 = vpack.c.b16 %v989, %v988
  %v1157 = vpack.c.b16 %v991, %v990
  %v1158 = vpack.c.b16 %v993, %v992
  %v1159 = vpack.c.b16 %v995, %v994
  %v1160 = vpack.c.b16 %v997, %v996
  %v1161 = vpack.c.b16 %v999, %v998
  %v1162 = vpack.c.b16 %v1001, %v1000
  %v1163 = vpack.c.b16 %v1003, %v1002
  %v1164 = vpack.c.b16 %v1005, %v1004
  %v1165 = vpack.c.b16 %v1007, %v1006
  %v1166 = vpack.c.b16 %v1009, %v1008
  %v1167 = vpack.c.b16 %v1011, %v1010
  %v1168 = vpack.c.b16 %v1013, %v1012
  %v1169 = vpack.c.b16 %v1015, %v1014
  %v1170 = vpack.c.b16 %v1017, %v1016
  %v1171 = vpack.c.b16 %v1019, %v1018
  %v1172 = vpack.c.b16 %v1021, %v1020
  %v1173 = vpack.c.b16 %v1023, %v1022
  %v1174 = vpack.c.b16 %v1025, %v1024
  %v1175 = vpack.c.b16 %v1027, %v1026
  %v1176 = vpack.c.b16 %v1029, %v1028
  %v1177 = vpack.c.b16 %v1031, %v1030
  %v1178 = vpack.c.b16 %v1033, %v1032
  %v1179 = vpack.c.b16 %v1035, %v1034
  %v1180 = vpack.c.b16 %v1037, %v1036
  %v1181 = vpack.c.b16 %v1039, %v1038
  %v1182 = vpack.c.b16 %v1041, %v1040
  %v1183 = vpack.c.b16 %v1043, %v1042
  %v1184 = vpack.c.b16 %v1045, %v1044
  %v1185 = vpack.c.b16 %v1047, %v1046
  %v1186 = vpack.c.b16 %v1049, %v1048
  %v1187 = vpack.c.b16 %v1051, %v1050
  %v1188 = vpack.c.b16 %v1053, %v1052
  %v1189 = vpack.c.b16 %v1055, %v1054
  %v1190 = vpack.c.b16 %v1057, %v1056
  %v1191 = vpack.c.b16 %v1059, %v1058
  %v1192 = vpack.c.b16 %v1061, %v1060
  %v1193 = vpack.c.b16 %v1063, %v1062
  %v1194 = vpack.c.b16 %v1065, %v1064
  %v1195 = vpack.c.b16 %v1067, %v1066
  %v1196 = vpack.c.b16 %v1069, %v1068
  %v1197 = vpack.c.b16 %v1071, %v1070
  %v1198 = vpack.c.b16 %v1073, %v1072
  %v1199 = vpack.c.b16 %v1075, %v1074
  %v1200 = vpack.c.b16 %v1077, %v1076
  %v1201 = vpack.c.b16 %v1079, %v1078
  %v1202 = vpack.c.b16 %v1081, %v1080
  %v1203 = vpack.c.b16 %v1083, %v1082
  %v1204 = vpack.c.b16 %v1085, %v1084
  %v1205 = vpack.c.b16 %v1087, %v1086
  %v1206 = vpack.c.b16 %v1089, %v1088
  %v1207 = vpack.c.b16 %v1091, %v1090
  %v1208 = vpack.c.b16 %v1093, %v1092
  %v1209 = vpack.c.b16 %v1095, %v1094
  %v1210 = vpack.c.b16 %v1097, %v1096
  %v1211 = vpack.c.b16 %v1099, %v1098
  %v1212 = vpack.c.b16 %v1101, %v1100
  %v1213 = vpack.c.b16 %v1103, %v1102
  %v1214 = vpack.c.b16 %v1105, %v1104
  %v1215 = vpack.c.b16 %v1107, %v1106
  %v1216 = vpack.c.b16 %v1109, %v1108
  %v1217 = vpack.c.b16 %v1111, %v1110
  %v1218 = vpack.c.b16 %v1113, %v1112
  %v1219 = vpack.c.b16 %v1115, %v1114
  %v1220 = vpack.c.b16 %v1117, %v1116
  %v1221 = vpack.c.b16 %v1119, %v1118
  %v1222 = vpack.c.b16 %v1121, %v1120
  %v1223 = vpack.c.b16 %v1123, %v1122
  %v1224 = vpack.c.b16 %v1125, %v1124
  %v1225 = vpack.c.b16 %v1127, %v1126
  %v1226 = vpack.c.b16 %v1129, %v1128
  %v1227 = vpack.c.b16 %v1131, %v1130
  %v1228 = vpack.c.b16 %v1133, %v1132
  %v1229 = vpack.c.b16 %v1135, %v1134
  %v1230 = vpack.c.b16 %v1137, %v1136
  %v1231 = vpack.c.b16 %v1139, %v1138
  %v1232 = vpack.c.b16 %v1141, %v1140
  %v1233 = vpack.c.b16 %v1143, %v1142
  %vm1323 = vcmask 203776
  %v1325 = vsel %vm1323, %v416, 0
  %v1328 = vsel %vm1323, %v428, 0
  %v1331 = vsel %vm1323, %v440, 0
  %v1334 = vsel %vm1323, %v452, 0
  %v1337 = vsel %vm1323, %v464, 0
  %v1340 = vsel %vm1323, %v476, 0
  %v1343 = vsel %vm1323, %v488, 0
  %v1346 = vsel %vm1323, %v500, 0
  %v1349 = vsel %vm1323, %v512, 0
  %v1352 = vsel %vm1323, %v524, 0
  %v1355 = vsel %vm1323, %v536, 0
  %v1358 = vsel %vm1323, %v548, 0
  %v1361 = vsel %vm1323, %v560, 0
  %v1364 = vsel %vm1323, %v572, 0
  %v1367 = vsel %vm1323, %v584, 0
  %v1370 = vsel %vm1323, %v596, 0
  %vm1372 = vcmask 1043456
  %vm1373 = vcmask 1044480
  %v1374 = vsel %vm1372, 4294967295, 65535
  %v1375 = vsel %vm1373, %v1374, 0
  %v1377 = vand.u32 %v1233, %v1375
  %1379 = vmatprep.subr.bf16.mxu0 0
  %1380 = vmatpush1.bf16.msra.mxu0 %v1151
  %1381 = vmatprep.subr.bf16.mxu0 0
  %1382 = vmatpush1.bf16.msra.mxu0 %v1150
  %1383 = vmatprep.subr.bf16.mxu0 0
  %1384 = vmatpush1.bf16.msra.mxu0 %v1149
  %1385 = vmatprep.subr.bf16.mxu0 0
  %1386 = vmatpush1.bf16.msra.mxu0 %v1148
  %1387 = vmatprep.subr.bf16.mxu0 0
  %1388 = vmatpush1.bf16.msra.mxu0 %v1147
  %1389 = vmatprep.subr.bf16.mxu0 0
  %1390 = vmatpush1.bf16.msra.mxu0 %v1146
  %1391 = vmatprep.subr.bf16.mxu0 0
  %1392 = vmatpush1.bf16.msra.mxu0 %v1145
  %1393 = vmatprep.subr.bf16.mxu0 0
  %1394 = vmatpush1.bf16.msra.mxu0 %v1144
  %1395 = vmatprep.subr.bf16.mxu0 0
  %1396 = vmatpush2.bf16.msra.mxu0 %v1159
  %1397 = vmatprep.subr.bf16.mxu0 0
  %1398 = vmatpush2.bf16.msra.mxu0 %v1158
  %1399 = vmatprep.subr.bf16.mxu0 0
  %1400 = vmatpush2.bf16.msra.mxu0 %v1157
  %1401 = vmatprep.subr.bf16.mxu0 0
  %1402 = vmatpush2.bf16.msra.mxu0 %v1156
  %1403 = vmatprep.subr.bf16.mxu0 0
  %1404 = vmatpush2.bf16.msra.mxu0 %v1155
  %1405 = vmatprep.subr.bf16.mxu0 0
  %1406 = vmatpush2.bf16.msra.mxu0 %v1154
  %1407 = vmatprep.subr.bf16.mxu0 0
  %1408 = vmatpush2.bf16.msra.mxu0 %v1153
  %1409 = vmatprep.subr.bf16.mxu0 0
  %1410 = vmatpush2.bf16.msra.mxu0 %v1152
  %1411 = vmatprep.mubr.bf16.mxu0 %v406
  %1412 = vmatmul.mubr.bf16.gmra.mxu0 %v405
  %v1413 = vpop.f32.mrf.mxu0
  %v1414 = vadd.f32 %v782, %v1413
  %v1415 = vpop.f32.mrf.mxu0
  %v1416 = vpop.f32.mrf.mxu0
  %v1417 = vadd.f32 %v782, %v1416
  %v1418 = vpop.f32.mrf.mxu0
  %1419 = vmatprep.mubr.bf16.mxu0 %v418
  %1420 = vmatmul.mubr.bf16.gmra.mxu0 %v417
  %v1421 = vpop.f32.mrf.mxu0
  %v1422 = vadd.f32 %v782, %v1421
  %v1423 = vpop.f32.mrf.mxu0
  %v1424 = vpop.f32.mrf.mxu0
  %v1425 = vadd.f32 %v782, %v1424
  %v1426 = vpop.f32.mrf.mxu0
  %1427 = vmatprep.mubr.bf16.mxu0 %v430
  %1428 = vmatmul.mubr.bf16.gmra.mxu0 %v429
  %v1429 = vpop.f32.mrf.mxu0
  %v1430 = vadd.f32 %v782, %v1429
  %v1431 = vpop.f32.mrf.mxu0
  %v1432 = vpop.f32.mrf.mxu0
  %v1433 = vadd.f32 %v782, %v1432
  %v1434 = vpop.f32.mrf.mxu0
  %1435 = vmatprep.mubr.bf16.mxu0 %v442
  %1436 = vmatmul.mubr.bf16.gmra.mxu0 %v441
  %v1437 = vpop.f32.mrf.mxu0
  %v1438 = vadd.f32 %v782, %v1437
  %v1439 = vpop.f32.mrf.mxu0
  %v1440 = vpop.f32.mrf.mxu0
  %v1441 = vadd.f32 %v782, %v1440
  %v1442 = vpop.f32.mrf.mxu0
  %1443 = vmatprep.mubr.bf16.mxu0 %v454
  %1444 = vmatmul.mubr.bf16.gmra.mxu0 %v453
  %v1445 = vpop.f32.mrf.mxu0
  %v1446 = vadd.f32 %v782, %v1445
  %v1447 = vpop.f32.mrf.mxu0
  %v1448 = vpop.f32.mrf.mxu0
  %v1449 = vadd.f32 %v782, %v1448
  %v1450 = vpop.f32.mrf.mxu0
  %1451 = vmatprep.mubr.bf16.mxu0 %v466
  %1452 = vmatmul.mubr.bf16.gmra.mxu0 %v465
  %v1453 = vpop.f32.mrf.mxu0
  %v1454 = vadd.f32 %v782, %v1453
  %v1455 = vpop.f32.mrf.mxu0
  %v1456 = vpop.f32.mrf.mxu0
  %v1457 = vadd.f32 %v782, %v1456
  %v1458 = vpop.f32.mrf.mxu0
  %1459 = vmatprep.mubr.bf16.mxu0 %v478
  %1460 = vmatmul.mubr.bf16.gmra.mxu0 %v477
  %v1461 = vpop.f32.mrf.mxu0
  %v1462 = vadd.f32 %v782, %v1461
  %v1463 = vpop.f32.mrf.mxu0
  %v1464 = vpop.f32.mrf.mxu0
  %v1465 = vadd.f32 %v782, %v1464
  %v1466 = vpop.f32.mrf.mxu0
  %1467 = vmatprep.mubr.bf16.mxu0 %v490
  %1468 = vmatmul.mubr.bf16.gmra.mxu0 %v489
  %v1469 = vpop.f32.mrf.mxu0
  %v1470 = vadd.f32 %v782, %v1469
  %v1471 = vpop.f32.mrf.mxu0
  %v1472 = vpop.f32.mrf.mxu0
  %v1473 = vadd.f32 %v782, %v1472
  %v1474 = vpop.f32.mrf.mxu0
  %1475 = vmatprep.mubr.bf16.mxu0 %v502
  %1476 = vmatmul.mubr.bf16.gmra.mxu0 %v501
  %v1477 = vpop.f32.mrf.mxu0
  %v1478 = vadd.f32 %v782, %v1477
  %v1479 = vpop.f32.mrf.mxu0
  %v1480 = vpop.f32.mrf.mxu0
  %v1481 = vadd.f32 %v782, %v1480
  %v1482 = vpop.f32.mrf.mxu0
  %1483 = vmatprep.mubr.bf16.mxu0 %v514
  %1484 = vmatmul.mubr.bf16.gmra.mxu0 %v513
  %v1485 = vpop.f32.mrf.mxu0
  %v1486 = vadd.f32 %v782, %v1485
  %v1487 = vpop.f32.mrf.mxu0
  %v1488 = vpop.f32.mrf.mxu0
  %v1489 = vadd.f32 %v782, %v1488
  %v1490 = vpop.f32.mrf.mxu0
  %1491 = vmatprep.mubr.bf16.mxu0 %v526
  %1492 = vmatmul.mubr.bf16.gmra.mxu0 %v525
  %v1493 = vpop.f32.mrf.mxu0
  %v1494 = vadd.f32 %v782, %v1493
  %v1495 = vpop.f32.mrf.mxu0
  %v1496 = vpop.f32.mrf.mxu0
  %v1497 = vadd.f32 %v782, %v1496
  %v1498 = vpop.f32.mrf.mxu0
  %1499 = vmatprep.mubr.bf16.mxu0 %v538
  %1500 = vmatmul.mubr.bf16.gmra.mxu0 %v537
  %v1501 = vpop.f32.mrf.mxu0
  %v1502 = vadd.f32 %v782, %v1501
  %v1503 = vpop.f32.mrf.mxu0
  %v1504 = vpop.f32.mrf.mxu0
  %v1505 = vadd.f32 %v782, %v1504
  %v1506 = vpop.f32.mrf.mxu0
  %1507 = vmatprep.mubr.bf16.mxu0 %v550
  %1508 = vmatmul.mubr.bf16.gmra.mxu0 %v549
  %v1509 = vpop.f32.mrf.mxu0
  %v1510 = vadd.f32 %v782, %v1509
  %v1511 = vpop.f32.mrf.mxu0
  %v1512 = vpop.f32.mrf.mxu0
  %v1513 = vadd.f32 %v782, %v1512
  %v1514 = vpop.f32.mrf.mxu0
  %1515 = vmatprep.mubr.bf16.mxu0 %v562
  %1516 = vmatmul.mubr.bf16.gmra.mxu0 %v561
  %v1517 = vpop.f32.mrf.mxu0
  %v1518 = vadd.f32 %v782, %v1517
  %v1519 = vpop.f32.mrf.mxu0
  %v1520 = vpop.f32.mrf.mxu0
  %v1521 = vadd.f32 %v782, %v1520
  %v1522 = vpop.f32.mrf.mxu0
  %1523 = vmatprep.mubr.bf16.mxu0 %v574
  %1524 = vmatmul.mubr.bf16.gmra.mxu0 %v573
  %v1525 = vpop.f32.mrf.mxu0
  %v1526 = vadd.f32 %v782, %v1525
  %v1527 = vpop.f32.mrf.mxu0
  %v1528 = vpop.f32.mrf.mxu0
  %v1529 = vadd.f32 %v782, %v1528
  %v1530 = vpop.f32.mrf.mxu0
  %1531 = vmatprep.mubr.bf16.mxu0 %v586
  %1532 = vmatmul.mubr.bf16.gmra.mxu0 %v585
  %v1533 = vpop.f32.mrf.mxu0
  %v1534 = vadd.f32 %v782, %v1533
  %v1535 = vpop.f32.mrf.mxu0
  %v1536 = vpop.f32.mrf.mxu0
  %v1537 = vadd.f32 %v782, %v1536
  %v1538 = vpop.f32.mrf.mxu0
  %1539 = vdwg.mxu0
  %1540 = vmatprep.subr.bf16.mxu0 0
  %1541 = vmatpush1.bf16.msra.mxu0 %v1167
  %1542 = vmatprep.subr.bf16.mxu0 0
  %1543 = vmatpush1.bf16.msra.mxu0 %v1166
  %1544 = vmatprep.subr.bf16.mxu0 0
  %1545 = vmatpush1.bf16.msra.mxu0 %v1165
  %1546 = vmatprep.subr.bf16.mxu0 0
  %1547 = vmatpush1.bf16.msra.mxu0 %v1164
  %1548 = vmatprep.subr.bf16.mxu0 0
  %1549 = vmatpush1.bf16.msra.mxu0 %v1163
  %1550 = vmatprep.subr.bf16.mxu0 0
  %1551 = vmatpush1.bf16.msra.mxu0 %v1162
  %1552 = vmatprep.subr.bf16.mxu0 0
  %1553 = vmatpush1.bf16.msra.mxu0 %v1161
  %1554 = vmatprep.subr.bf16.mxu0 0
  %1555 = vmatpush1.bf16.msra.mxu0 %v1160
  %1556 = vmatprep.subr.bf16.mxu0 0
  %1557 = vmatpush2.bf16.msra.mxu0 %v1175
  %1558 = vmatprep.subr.bf16.mxu0 0
  %1559 = vmatpush2.bf16.msra.mxu0 %v1174
  %1560 = vmatprep.subr.bf16.mxu0 0
  %1561 = vmatpush2.bf16.msra.mxu0 %v1173
  %1562 = vmatprep.subr.bf16.mxu0 0
  %1563 = vmatpush2.bf16.msra.mxu0 %v1172
  %1564 = vmatprep.subr.bf16.mxu0 0
  %1565 = vmatpush2.bf16.msra.mxu0 %v1171
  %1566 = vmatprep.subr.bf16.mxu0 0
  %1567 = vmatpush2.bf16.msra.mxu0 %v1170
  %1568 = vmatprep.subr.bf16.mxu0 0
  %1569 = vmatpush2.bf16.msra.mxu0 %v1169
  %1570 = vmatprep.subr.bf16.mxu0 0
  %1571 = vmatpush2.bf16.msra.mxu0 %v1168
  %1572 = vmatprep.mubr.bf16.mxu0 %v408
  %1573 = vmatmul.mubr.bf16.gmra.mxu0 %v407
  %v1574 = vpop.f32.mrf.mxu0
  %v1575 = vadd.f32 %v1414, %v1574
  %v1576 = vpop.f32.mrf.mxu0
  %v1577 = vpop.f32.mrf.mxu0
  %v1578 = vadd.f32 %v1417, %v1577
  %v1579 = vpop.f32.mrf.mxu0
  %1580 = vmatprep.mubr.bf16.mxu0 %v420
  %1581 = vmatmul.mubr.bf16.gmra.mxu0 %v419
  %v1582 = vpop.f32.mrf.mxu0
  %v1583 = vadd.f32 %v1422, %v1582
  %v1584 = vpop.f32.mrf.mxu0
  %v1585 = vpop.f32.mrf.mxu0
  %v1586 = vadd.f32 %v1425, %v1585
  %v1587 = vpop.f32.mrf.mxu0
  %1588 = vmatprep.mubr.bf16.mxu0 %v432
  %1589 = vmatmul.mubr.bf16.gmra.mxu0 %v431
  %v1590 = vpop.f32.mrf.mxu0
  %v1591 = vadd.f32 %v1430, %v1590
  %v1592 = vpop.f32.mrf.mxu0
  %v1593 = vpop.f32.mrf.mxu0
  %v1594 = vadd.f32 %v1433, %v1593
  %v1595 = vpop.f32.mrf.mxu0
  %1596 = vmatprep.mubr.bf16.mxu0 %v444
  %1597 = vmatmul.mubr.bf16.gmra.mxu0 %v443
  %v1598 = vpop.f32.mrf.mxu0
  %v1599 = vadd.f32 %v1438, %v1598
  %v1600 = vpop.f32.mrf.mxu0
  %v1601 = vpop.f32.mrf.mxu0
  %v1602 = vadd.f32 %v1441, %v1601
  %v1603 = vpop.f32.mrf.mxu0
  %1604 = vmatprep.mubr.bf16.mxu0 %v456
  %1605 = vmatmul.mubr.bf16.gmra.mxu0 %v455
  %v1606 = vpop.f32.mrf.mxu0
  %v1607 = vadd.f32 %v1446, %v1606
  %v1608 = vpop.f32.mrf.mxu0
  %v1609 = vpop.f32.mrf.mxu0
  %v1610 = vadd.f32 %v1449, %v1609
  %v1611 = vpop.f32.mrf.mxu0
  %1612 = vmatprep.mubr.bf16.mxu0 %v468
  %1613 = vmatmul.mubr.bf16.gmra.mxu0 %v467
  %v1614 = vpop.f32.mrf.mxu0
  %v1615 = vadd.f32 %v1454, %v1614
  %v1616 = vpop.f32.mrf.mxu0
  %v1617 = vpop.f32.mrf.mxu0
  %v1618 = vadd.f32 %v1457, %v1617
  %v1619 = vpop.f32.mrf.mxu0
  %1620 = vmatprep.mubr.bf16.mxu0 %v480
  %1621 = vmatmul.mubr.bf16.gmra.mxu0 %v479
  %v1622 = vpop.f32.mrf.mxu0
  %v1623 = vadd.f32 %v1462, %v1622
  %v1624 = vpop.f32.mrf.mxu0
  %v1625 = vpop.f32.mrf.mxu0
  %v1626 = vadd.f32 %v1465, %v1625
  %v1627 = vpop.f32.mrf.mxu0
  %1628 = vmatprep.mubr.bf16.mxu0 %v492
  %1629 = vmatmul.mubr.bf16.gmra.mxu0 %v491
  %v1630 = vpop.f32.mrf.mxu0
  %v1631 = vadd.f32 %v1470, %v1630
  %v1632 = vpop.f32.mrf.mxu0
  %v1633 = vpop.f32.mrf.mxu0
  %v1634 = vadd.f32 %v1473, %v1633
  %v1635 = vpop.f32.mrf.mxu0
  %1636 = vmatprep.mubr.bf16.mxu0 %v504
  %1637 = vmatmul.mubr.bf16.gmra.mxu0 %v503
  %v1638 = vpop.f32.mrf.mxu0
  %v1639 = vadd.f32 %v1478, %v1638
  %v1640 = vpop.f32.mrf.mxu0
  %v1641 = vpop.f32.mrf.mxu0
  %v1642 = vadd.f32 %v1481, %v1641
  %v1643 = vpop.f32.mrf.mxu0
  %1644 = vmatprep.mubr.bf16.mxu0 %v516
  %1645 = vmatmul.mubr.bf16.gmra.mxu0 %v515
  %v1646 = vpop.f32.mrf.mxu0
  %v1647 = vadd.f32 %v1486, %v1646
  %v1648 = vpop.f32.mrf.mxu0
  %v1649 = vpop.f32.mrf.mxu0
  %v1650 = vadd.f32 %v1489, %v1649
  %v1651 = vpop.f32.mrf.mxu0
  %1652 = vmatprep.mubr.bf16.mxu0 %v528
  %1653 = vmatmul.mubr.bf16.gmra.mxu0 %v527
  %v1654 = vpop.f32.mrf.mxu0
  %v1655 = vadd.f32 %v1494, %v1654
  %v1656 = vpop.f32.mrf.mxu0
  %v1657 = vpop.f32.mrf.mxu0
  %v1658 = vadd.f32 %v1497, %v1657
  %v1659 = vpop.f32.mrf.mxu0
  %1660 = vmatprep.mubr.bf16.mxu0 %v540
  %1661 = vmatmul.mubr.bf16.gmra.mxu0 %v539
  %v1662 = vpop.f32.mrf.mxu0
  %v1663 = vadd.f32 %v1502, %v1662
  %v1664 = vpop.f32.mrf.mxu0
  %v1665 = vpop.f32.mrf.mxu0
  %v1666 = vadd.f32 %v1505, %v1665
  %v1667 = vpop.f32.mrf.mxu0
  %1668 = vmatprep.mubr.bf16.mxu0 %v552
  %1669 = vmatmul.mubr.bf16.gmra.mxu0 %v551
  %v1670 = vpop.f32.mrf.mxu0
  %v1671 = vadd.f32 %v1510, %v1670
  %v1672 = vpop.f32.mrf.mxu0
  %v1673 = vpop.f32.mrf.mxu0
  %v1674 = vadd.f32 %v1513, %v1673
  %v1675 = vpop.f32.mrf.mxu0
  %1676 = vmatprep.mubr.bf16.mxu0 %v564
  %1677 = vmatmul.mubr.bf16.gmra.mxu0 %v563
  %v1678 = vpop.f32.mrf.mxu0
  %v1679 = vadd.f32 %v1518, %v1678
  %v1680 = vpop.f32.mrf.mxu0
  %v1681 = vpop.f32.mrf.mxu0
  %v1682 = vadd.f32 %v1521, %v1681
  %v1683 = vpop.f32.mrf.mxu0
  %1684 = vmatprep.mubr.bf16.mxu0 %v576
  %1685 = vmatmul.mubr.bf16.gmra.mxu0 %v575
  %v1686 = vpop.f32.mrf.mxu0
  %v1687 = vadd.f32 %v1526, %v1686
  %v1688 = vpop.f32.mrf.mxu0
  %v1689 = vpop.f32.mrf.mxu0
  %v1690 = vadd.f32 %v1529, %v1689
  %v1691 = vpop.f32.mrf.mxu0
  %1692 = vmatprep.mubr.bf16.mxu0 %v588
  %1693 = vmatmul.mubr.bf16.gmra.mxu0 %v587
  %v1694 = vpop.f32.mrf.mxu0
  %v1695 = vadd.f32 %v1534, %v1694
  %v1696 = vpop.f32.mrf.mxu0
  %v1697 = vpop.f32.mrf.mxu0
  %v1698 = vadd.f32 %v1537, %v1697
  %v1699 = vpop.f32.mrf.mxu0
  %1700 = vdwg.mxu0
  %1701 = vmatprep.subr.bf16.mxu0 0
  %1702 = vmatpush1.bf16.msra.mxu0 %v1183
  %1703 = vmatprep.subr.bf16.mxu0 0
  %1704 = vmatpush1.bf16.msra.mxu0 %v1182
  %1705 = vmatprep.subr.bf16.mxu0 0
  %1706 = vmatpush1.bf16.msra.mxu0 %v1181
  %1707 = vmatprep.subr.bf16.mxu0 0
  %1708 = vmatpush1.bf16.msra.mxu0 %v1180
  %1709 = vmatprep.subr.bf16.mxu0 0
  %1710 = vmatpush1.bf16.msra.mxu0 %v1179
  %1711 = vmatprep.subr.bf16.mxu0 0
  %1712 = vmatpush1.bf16.msra.mxu0 %v1178
  %1713 = vmatprep.subr.bf16.mxu0 0
  %1714 = vmatpush1.bf16.msra.mxu0 %v1177
  %1715 = vmatprep.subr.bf16.mxu0 0
  %1716 = vmatpush1.bf16.msra.mxu0 %v1176
  %1717 = vmatprep.subr.bf16.mxu0 0
  %1718 = vmatpush2.bf16.msra.mxu0 %v1191
  %1719 = vmatprep.subr.bf16.mxu0 0
  %1720 = vmatpush2.bf16.msra.mxu0 %v1190
  %1721 = vmatprep.subr.bf16.mxu0 0
  %1722 = vmatpush2.bf16.msra.mxu0 %v1189
  %1723 = vmatprep.subr.bf16.mxu0 0
  %1724 = vmatpush2.bf16.msra.mxu0 %v1188
  %1725 = vmatprep.subr.bf16.mxu0 0
  %1726 = vmatpush2.bf16.msra.mxu0 %v1187
  %1727 = vmatprep.subr.bf16.mxu0 0
  %1728 = vmatpush2.bf16.msra.mxu0 %v1186
  %1729 = vmatprep.subr.bf16.mxu0 0
  %1730 = vmatpush2.bf16.msra.mxu0 %v1185
  %1731 = vmatprep.subr.bf16.mxu0 0
  %1732 = vmatpush2.bf16.msra.mxu0 %v1184
  %1733 = vmatprep.mubr.bf16.mxu0 %v410
  %1734 = vmatmul.mubr.bf16.gmra.mxu0 %v409
  %v1735 = vpop.f32.mrf.mxu0
  %v1736 = vadd.f32 %v1575, %v1735
  %v1737 = vpop.f32.mrf.mxu0
  %v1738 = vpop.f32.mrf.mxu0
  %v1739 = vadd.f32 %v1578, %v1738
  %v1740 = vpop.f32.mrf.mxu0
  %1741 = vmatprep.mubr.bf16.mxu0 %v422
  %1742 = vmatmul.mubr.bf16.gmra.mxu0 %v421
  %v1743 = vpop.f32.mrf.mxu0
  %v1744 = vadd.f32 %v1583, %v1743
  %v1745 = vpop.f32.mrf.mxu0
  %v1746 = vpop.f32.mrf.mxu0
  %v1747 = vadd.f32 %v1586, %v1746
  %v1748 = vpop.f32.mrf.mxu0
  %1749 = vmatprep.mubr.bf16.mxu0 %v434
  %1750 = vmatmul.mubr.bf16.gmra.mxu0 %v433
  %v1751 = vpop.f32.mrf.mxu0
  %v1752 = vadd.f32 %v1591, %v1751
  %v1753 = vpop.f32.mrf.mxu0
  %v1754 = vpop.f32.mrf.mxu0
  %v1755 = vadd.f32 %v1594, %v1754
  %v1756 = vpop.f32.mrf.mxu0
  %1757 = vmatprep.mubr.bf16.mxu0 %v446
  %1758 = vmatmul.mubr.bf16.gmra.mxu0 %v445
  %v1759 = vpop.f32.mrf.mxu0
  %v1760 = vadd.f32 %v1599, %v1759
  %v1761 = vpop.f32.mrf.mxu0
  %v1762 = vpop.f32.mrf.mxu0
  %v1763 = vadd.f32 %v1602, %v1762
  %v1764 = vpop.f32.mrf.mxu0
  %1765 = vmatprep.mubr.bf16.mxu0 %v458
  %1766 = vmatmul.mubr.bf16.gmra.mxu0 %v457
  %v1767 = vpop.f32.mrf.mxu0
  %v1768 = vadd.f32 %v1607, %v1767
  %v1769 = vpop.f32.mrf.mxu0
  %v1770 = vpop.f32.mrf.mxu0
  %v1771 = vadd.f32 %v1610, %v1770
  %v1772 = vpop.f32.mrf.mxu0
  %1773 = vmatprep.mubr.bf16.mxu0 %v470
  %1774 = vmatmul.mubr.bf16.gmra.mxu0 %v469
  %v1775 = vpop.f32.mrf.mxu0
  %v1776 = vadd.f32 %v1615, %v1775
  %v1777 = vpop.f32.mrf.mxu0
  %v1778 = vpop.f32.mrf.mxu0
  %v1779 = vadd.f32 %v1618, %v1778
  %v1780 = vpop.f32.mrf.mxu0
  %1781 = vmatprep.mubr.bf16.mxu0 %v482
  %1782 = vmatmul.mubr.bf16.gmra.mxu0 %v481
  %v1783 = vpop.f32.mrf.mxu0
  %v1784 = vadd.f32 %v1623, %v1783
  %v1785 = vpop.f32.mrf.mxu0
  %v1786 = vpop.f32.mrf.mxu0
  %v1787 = vadd.f32 %v1626, %v1786
  %v1788 = vpop.f32.mrf.mxu0
  %1789 = vmatprep.mubr.bf16.mxu0 %v494
  %1790 = vmatmul.mubr.bf16.gmra.mxu0 %v493
  %v1791 = vpop.f32.mrf.mxu0
  %v1792 = vadd.f32 %v1631, %v1791
  %v1793 = vpop.f32.mrf.mxu0
  %v1794 = vpop.f32.mrf.mxu0
  %v1795 = vadd.f32 %v1634, %v1794
  %v1796 = vpop.f32.mrf.mxu0
  %1797 = vmatprep.mubr.bf16.mxu0 %v506
  %1798 = vmatmul.mubr.bf16.gmra.mxu0 %v505
  %v1799 = vpop.f32.mrf.mxu0
  %v1800 = vadd.f32 %v1639, %v1799
  %v1801 = vpop.f32.mrf.mxu0
  %v1802 = vpop.f32.mrf.mxu0
  %v1803 = vadd.f32 %v1642, %v1802
  %v1804 = vpop.f32.mrf.mxu0
  %1805 = vmatprep.mubr.bf16.mxu0 %v518
  %1806 = vmatmul.mubr.bf16.gmra.mxu0 %v517
  %v1807 = vpop.f32.mrf.mxu0
  %v1808 = vadd.f32 %v1647, %v1807
  %v1809 = vpop.f32.mrf.mxu0
  %v1810 = vpop.f32.mrf.mxu0
  %v1811 = vadd.f32 %v1650, %v1810
  %v1812 = vpop.f32.mrf.mxu0
  %1813 = vmatprep.mubr.bf16.mxu0 %v530
  %1814 = vmatmul.mubr.bf16.gmra.mxu0 %v529
  %v1815 = vpop.f32.mrf.mxu0
  %v1816 = vadd.f32 %v1655, %v1815
  %v1817 = vpop.f32.mrf.mxu0
  %v1818 = vpop.f32.mrf.mxu0
  %v1819 = vadd.f32 %v1658, %v1818
  %v1820 = vpop.f32.mrf.mxu0
  %1821 = vmatprep.mubr.bf16.mxu0 %v542
  %1822 = vmatmul.mubr.bf16.gmra.mxu0 %v541
  %v1823 = vpop.f32.mrf.mxu0
  %v1824 = vadd.f32 %v1663, %v1823
  %v1825 = vpop.f32.mrf.mxu0
  %v1826 = vpop.f32.mrf.mxu0
  %v1827 = vadd.f32 %v1666, %v1826
  %v1828 = vpop.f32.mrf.mxu0
  %1829 = vmatprep.mubr.bf16.mxu0 %v554
  %1830 = vmatmul.mubr.bf16.gmra.mxu0 %v553
  %v1831 = vpop.f32.mrf.mxu0
  %v1832 = vadd.f32 %v1671, %v1831
  %v1833 = vpop.f32.mrf.mxu0
  %v1834 = vpop.f32.mrf.mxu0
  %v1835 = vadd.f32 %v1674, %v1834
  %v1836 = vpop.f32.mrf.mxu0
  %1837 = vmatprep.mubr.bf16.mxu0 %v566
  %1838 = vmatmul.mubr.bf16.gmra.mxu0 %v565
  %v1839 = vpop.f32.mrf.mxu0
  %v1840 = vadd.f32 %v1679, %v1839
  %v1841 = vpop.f32.mrf.mxu0
  %v1842 = vpop.f32.mrf.mxu0
  %v1843 = vadd.f32 %v1682, %v1842
  %v1844 = vpop.f32.mrf.mxu0
  %1845 = vmatprep.mubr.bf16.mxu0 %v578
  %1846 = vmatmul.mubr.bf16.gmra.mxu0 %v577
  %v1847 = vpop.f32.mrf.mxu0
  %v1848 = vadd.f32 %v1687, %v1847
  %v1849 = vpop.f32.mrf.mxu0
  %v1850 = vpop.f32.mrf.mxu0
  %v1851 = vadd.f32 %v1690, %v1850
  %v1852 = vpop.f32.mrf.mxu0
  %1853 = vmatprep.mubr.bf16.mxu0 %v590
  %1854 = vmatmul.mubr.bf16.gmra.mxu0 %v589
  %v1855 = vpop.f32.mrf.mxu0
  %v1856 = vadd.f32 %v1695, %v1855
  %v1857 = vpop.f32.mrf.mxu0
  %v1858 = vpop.f32.mrf.mxu0
  %v1859 = vadd.f32 %v1698, %v1858
  %v1860 = vpop.f32.mrf.mxu0
  %1861 = vdwg.mxu0
  %1862 = vmatprep.subr.bf16.mxu0 0
  %1863 = vmatpush1.bf16.msra.mxu0 %v1199
  %1864 = vmatprep.subr.bf16.mxu0 0
  %1865 = vmatpush1.bf16.msra.mxu0 %v1198
  %1866 = vmatprep.subr.bf16.mxu0 0
  %1867 = vmatpush1.bf16.msra.mxu0 %v1197
  %1868 = vmatprep.subr.bf16.mxu0 0
  %1869 = vmatpush1.bf16.msra.mxu0 %v1196
  %1870 = vmatprep.subr.bf16.mxu0 0
  %1871 = vmatpush1.bf16.msra.mxu0 %v1195
  %1872 = vmatprep.subr.bf16.mxu0 0
  %1873 = vmatpush1.bf16.msra.mxu0 %v1194
  %1874 = vmatprep.subr.bf16.mxu0 0
  %1875 = vmatpush1.bf16.msra.mxu0 %v1193
  %1876 = vmatprep.subr.bf16.mxu0 0
  %1877 = vmatpush1.bf16.msra.mxu0 %v1192
  %1878 = vmatprep.subr.bf16.mxu0 0
  %1879 = vmatpush2.bf16.msra.mxu0 %v1207
  %1880 = vmatprep.subr.bf16.mxu0 0
  %1881 = vmatpush2.bf16.msra.mxu0 %v1206
  %1882 = vmatprep.subr.bf16.mxu0 0
  %1883 = vmatpush2.bf16.msra.mxu0 %v1205
  %1884 = vmatprep.subr.bf16.mxu0 0
  %1885 = vmatpush2.bf16.msra.mxu0 %v1204
  %1886 = vmatprep.subr.bf16.mxu0 0
  %1887 = vmatpush2.bf16.msra.mxu0 %v1203
  %1888 = vmatprep.subr.bf16.mxu0 0
  %1889 = vmatpush2.bf16.msra.mxu0 %v1202
  %1890 = vmatprep.subr.bf16.mxu0 0
  %1891 = vmatpush2.bf16.msra.mxu0 %v1201
  %1892 = vmatprep.subr.bf16.mxu0 0
  %1893 = vmatpush2.bf16.msra.mxu0 %v1200
  %1894 = vmatprep.mubr.bf16.mxu0 %v412
  %1895 = vmatmul.mubr.bf16.gmra.mxu0 %v411
  %v1896 = vpop.f32.mrf.mxu0
  %v1897 = vadd.f32 %v1736, %v1896
  %v1898 = vpop.f32.mrf.mxu0
  %v1899 = vpop.f32.mrf.mxu0
  %v1900 = vadd.f32 %v1739, %v1899
  %v1901 = vpop.f32.mrf.mxu0
  %1902 = vmatprep.mubr.bf16.mxu0 %v424
  %1903 = vmatmul.mubr.bf16.gmra.mxu0 %v423
  %v1904 = vpop.f32.mrf.mxu0
  %v1905 = vadd.f32 %v1744, %v1904
  %v1906 = vpop.f32.mrf.mxu0
  %v1907 = vpop.f32.mrf.mxu0
  %v1908 = vadd.f32 %v1747, %v1907
  %v1909 = vpop.f32.mrf.mxu0
  %1910 = vmatprep.mubr.bf16.mxu0 %v436
  %1911 = vmatmul.mubr.bf16.gmra.mxu0 %v435
  %v1912 = vpop.f32.mrf.mxu0
  %v1913 = vadd.f32 %v1752, %v1912
  %v1914 = vpop.f32.mrf.mxu0
  %v1915 = vpop.f32.mrf.mxu0
  %v1916 = vadd.f32 %v1755, %v1915
  %v1917 = vpop.f32.mrf.mxu0
  %1918 = vmatprep.mubr.bf16.mxu0 %v448
  %1919 = vmatmul.mubr.bf16.gmra.mxu0 %v447
  %v1920 = vpop.f32.mrf.mxu0
  %v1921 = vadd.f32 %v1760, %v1920
  %v1922 = vpop.f32.mrf.mxu0
  %v1923 = vpop.f32.mrf.mxu0
  %v1924 = vadd.f32 %v1763, %v1923
  %v1925 = vpop.f32.mrf.mxu0
  %1926 = vmatprep.mubr.bf16.mxu0 %v460
  %1927 = vmatmul.mubr.bf16.gmra.mxu0 %v459
  %v1928 = vpop.f32.mrf.mxu0
  %v1929 = vadd.f32 %v1768, %v1928
  %v1930 = vpop.f32.mrf.mxu0
  %v1931 = vpop.f32.mrf.mxu0
  %v1932 = vadd.f32 %v1771, %v1931
  %v1933 = vpop.f32.mrf.mxu0
  %1934 = vmatprep.mubr.bf16.mxu0 %v472
  %1935 = vmatmul.mubr.bf16.gmra.mxu0 %v471
  %v1936 = vpop.f32.mrf.mxu0
  %v1937 = vadd.f32 %v1776, %v1936
  %v1938 = vpop.f32.mrf.mxu0
  %v1939 = vpop.f32.mrf.mxu0
  %v1940 = vadd.f32 %v1779, %v1939
  %v1941 = vpop.f32.mrf.mxu0
  %1942 = vmatprep.mubr.bf16.mxu0 %v484
  %1943 = vmatmul.mubr.bf16.gmra.mxu0 %v483
  %v1944 = vpop.f32.mrf.mxu0
  %v1945 = vadd.f32 %v1784, %v1944
  %v1946 = vpop.f32.mrf.mxu0
  %v1947 = vpop.f32.mrf.mxu0
  %v1948 = vadd.f32 %v1787, %v1947
  %v1949 = vpop.f32.mrf.mxu0
  %1950 = vmatprep.mubr.bf16.mxu0 %v496
  %1951 = vmatmul.mubr.bf16.gmra.mxu0 %v495
  %v1952 = vpop.f32.mrf.mxu0
  %v1953 = vadd.f32 %v1792, %v1952
  %v1954 = vpop.f32.mrf.mxu0
  %v1955 = vpop.f32.mrf.mxu0
  %v1956 = vadd.f32 %v1795, %v1955
  %v1957 = vpop.f32.mrf.mxu0
  %1958 = vmatprep.mubr.bf16.mxu0 %v508
  %1959 = vmatmul.mubr.bf16.gmra.mxu0 %v507
  %v1960 = vpop.f32.mrf.mxu0
  %v1961 = vadd.f32 %v1800, %v1960
  %v1962 = vpop.f32.mrf.mxu0
  %v1963 = vpop.f32.mrf.mxu0
  %v1964 = vadd.f32 %v1803, %v1963
  %v1965 = vpop.f32.mrf.mxu0
  %1966 = vmatprep.mubr.bf16.mxu0 %v520
  %1967 = vmatmul.mubr.bf16.gmra.mxu0 %v519
  %v1968 = vpop.f32.mrf.mxu0
  %v1969 = vadd.f32 %v1808, %v1968
  %v1970 = vpop.f32.mrf.mxu0
  %v1971 = vpop.f32.mrf.mxu0
  %v1972 = vadd.f32 %v1811, %v1971
  %v1973 = vpop.f32.mrf.mxu0
  %1974 = vmatprep.mubr.bf16.mxu0 %v532
  %1975 = vmatmul.mubr.bf16.gmra.mxu0 %v531
  %v1976 = vpop.f32.mrf.mxu0
  %v1977 = vadd.f32 %v1816, %v1976
  %v1978 = vpop.f32.mrf.mxu0
  %v1979 = vpop.f32.mrf.mxu0
  %v1980 = vadd.f32 %v1819, %v1979
  %v1981 = vpop.f32.mrf.mxu0
  %1982 = vmatprep.mubr.bf16.mxu0 %v544
  %1983 = vmatmul.mubr.bf16.gmra.mxu0 %v543
  %v1984 = vpop.f32.mrf.mxu0
  %v1985 = vadd.f32 %v1824, %v1984
  %v1986 = vpop.f32.mrf.mxu0
  %v1987 = vpop.f32.mrf.mxu0
  %v1988 = vadd.f32 %v1827, %v1987
  %v1989 = vpop.f32.mrf.mxu0
  %1990 = vmatprep.mubr.bf16.mxu0 %v556
  %1991 = vmatmul.mubr.bf16.gmra.mxu0 %v555
  %v1992 = vpop.f32.mrf.mxu0
  %v1993 = vadd.f32 %v1832, %v1992
  %v1994 = vpop.f32.mrf.mxu0
  %v1995 = vpop.f32.mrf.mxu0
  %v1996 = vadd.f32 %v1835, %v1995
  %v1997 = vpop.f32.mrf.mxu0
  %1998 = vmatprep.mubr.bf16.mxu0 %v568
  %1999 = vmatmul.mubr.bf16.gmra.mxu0 %v567
  %v2000 = vpop.f32.mrf.mxu0
  %v2001 = vadd.f32 %v1840, %v2000
  %v2002 = vpop.f32.mrf.mxu0
  %v2003 = vpop.f32.mrf.mxu0
  %v2004 = vadd.f32 %v1843, %v2003
  %v2005 = vpop.f32.mrf.mxu0
  %2006 = vmatprep.mubr.bf16.mxu0 %v580
  %2007 = vmatmul.mubr.bf16.gmra.mxu0 %v579
  %v2008 = vpop.f32.mrf.mxu0
  %v2009 = vadd.f32 %v1848, %v2008
  %v2010 = vpop.f32.mrf.mxu0
  %v2011 = vpop.f32.mrf.mxu0
  %v2012 = vadd.f32 %v1851, %v2011
  %v2013 = vpop.f32.mrf.mxu0
  %2014 = vmatprep.mubr.bf16.mxu0 %v592
  %2015 = vmatmul.mubr.bf16.gmra.mxu0 %v591
  %v2016 = vpop.f32.mrf.mxu0
  %v2017 = vadd.f32 %v1856, %v2016
  %v2018 = vpop.f32.mrf.mxu0
  %v2019 = vpop.f32.mrf.mxu0
  %v2020 = vadd.f32 %v1859, %v2019
  %v2021 = vpop.f32.mrf.mxu0
  %2022 = vdwg.mxu0
  %2023 = vmatprep.subr.bf16.mxu0 0
  %2024 = vmatpush1.bf16.msra.mxu0 %v1215
  %2025 = vmatprep.subr.bf16.mxu0 0
  %2026 = vmatpush1.bf16.msra.mxu0 %v1214
  %2027 = vmatprep.subr.bf16.mxu0 0
  %2028 = vmatpush1.bf16.msra.mxu0 %v1213
  %2029 = vmatprep.subr.bf16.mxu0 0
  %2030 = vmatpush1.bf16.msra.mxu0 %v1212
  %2031 = vmatprep.subr.bf16.mxu0 0
  %2032 = vmatpush1.bf16.msra.mxu0 %v1211
  %2033 = vmatprep.subr.bf16.mxu0 0
  %2034 = vmatpush1.bf16.msra.mxu0 %v1210
  %2035 = vmatprep.subr.bf16.mxu0 0
  %2036 = vmatpush1.bf16.msra.mxu0 %v1209
  %2037 = vmatprep.subr.bf16.mxu0 0
  %2038 = vmatpush1.bf16.msra.mxu0 %v1208
  %2039 = vmatprep.subr.bf16.mxu0 0
  %2040 = vmatpush2.bf16.msra.mxu0 %v1223
  %2041 = vmatprep.subr.bf16.mxu0 0
  %2042 = vmatpush2.bf16.msra.mxu0 %v1222
  %2043 = vmatprep.subr.bf16.mxu0 0
  %2044 = vmatpush2.bf16.msra.mxu0 %v1221
  %2045 = vmatprep.subr.bf16.mxu0 0
  %2046 = vmatpush2.bf16.msra.mxu0 %v1220
  %2047 = vmatprep.subr.bf16.mxu0 0
  %2048 = vmatpush2.bf16.msra.mxu0 %v1219
  %2049 = vmatprep.subr.bf16.mxu0 0
  %2050 = vmatpush2.bf16.msra.mxu0 %v1218
  %2051 = vmatprep.subr.bf16.mxu0 0
  %2052 = vmatpush2.bf16.msra.mxu0 %v1217
  %2053 = vmatprep.subr.bf16.mxu0 0
  %2054 = vmatpush2.bf16.msra.mxu0 %v1216
  %2055 = vmatprep.mubr.bf16.mxu0 %v414
  %2056 = vmatmul.mubr.bf16.gmra.mxu0 %v413
  %v2057 = vpop.f32.mrf.mxu0
  %v2058 = vadd.f32 %v1897, %v2057
  %v2059 = vpop.f32.mrf.mxu0
  %v2060 = vpop.f32.mrf.mxu0
  %v2061 = vadd.f32 %v1900, %v2060
  %v2062 = vpop.f32.mrf.mxu0
  %2063 = vmatprep.mubr.bf16.mxu0 %v426
  %2064 = vmatmul.mubr.bf16.gmra.mxu0 %v425
  %v2065 = vpop.f32.mrf.mxu0
  %v2066 = vadd.f32 %v1905, %v2065
  %v2067 = vpop.f32.mrf.mxu0
  %v2068 = vpop.f32.mrf.mxu0
  %v2069 = vadd.f32 %v1908, %v2068
  %v2070 = vpop.f32.mrf.mxu0
  %2071 = vmatprep.mubr.bf16.mxu0 %v438
  %2072 = vmatmul.mubr.bf16.gmra.mxu0 %v437
  %v2073 = vpop.f32.mrf.mxu0
  %v2074 = vadd.f32 %v1913, %v2073
  %v2075 = vpop.f32.mrf.mxu0
  %v2076 = vpop.f32.mrf.mxu0
  %v2077 = vadd.f32 %v1916, %v2076
  %v2078 = vpop.f32.mrf.mxu0
  %2079 = vmatprep.mubr.bf16.mxu0 %v450
  %2080 = vmatmul.mubr.bf16.gmra.mxu0 %v449
  %v2081 = vpop.f32.mrf.mxu0
  %v2082 = vadd.f32 %v1921, %v2081
  %v2083 = vpop.f32.mrf.mxu0
  %v2084 = vpop.f32.mrf.mxu0
  %v2085 = vadd.f32 %v1924, %v2084
  %v2086 = vpop.f32.mrf.mxu0
  %2087 = vmatprep.mubr.bf16.mxu0 %v462
  %2088 = vmatmul.mubr.bf16.gmra.mxu0 %v461
  %v2089 = vpop.f32.mrf.mxu0
  %v2090 = vadd.f32 %v1929, %v2089
  %v2091 = vpop.f32.mrf.mxu0
  %v2092 = vpop.f32.mrf.mxu0
  %v2093 = vadd.f32 %v1932, %v2092
  %v2094 = vpop.f32.mrf.mxu0
  %2095 = vmatprep.mubr.bf16.mxu0 %v474
  %2096 = vmatmul.mubr.bf16.gmra.mxu0 %v473
  %v2097 = vpop.f32.mrf.mxu0
  %v2098 = vadd.f32 %v1937, %v2097
  %v2099 = vpop.f32.mrf.mxu0
  %v2100 = vpop.f32.mrf.mxu0
  %v2101 = vadd.f32 %v1940, %v2100
  %v2102 = vpop.f32.mrf.mxu0
  %2103 = vmatprep.mubr.bf16.mxu0 %v486
  %2104 = vmatmul.mubr.bf16.gmra.mxu0 %v485
  %v2105 = vpop.f32.mrf.mxu0
  %v2106 = vadd.f32 %v1945, %v2105
  %v2107 = vpop.f32.mrf.mxu0
  %v2108 = vpop.f32.mrf.mxu0
  %v2109 = vadd.f32 %v1948, %v2108
  %v2110 = vpop.f32.mrf.mxu0
  %2111 = vmatprep.mubr.bf16.mxu0 %v498
  %2112 = vmatmul.mubr.bf16.gmra.mxu0 %v497
  %v2113 = vpop.f32.mrf.mxu0
  %v2114 = vadd.f32 %v1953, %v2113
  %v2115 = vpop.f32.mrf.mxu0
  %v2116 = vpop.f32.mrf.mxu0
  %v2117 = vadd.f32 %v1956, %v2116
  %v2118 = vpop.f32.mrf.mxu0
  %2119 = vmatprep.mubr.bf16.mxu0 %v510
  %2120 = vmatmul.mubr.bf16.gmra.mxu0 %v509
  %v2121 = vpop.f32.mrf.mxu0
  %v2122 = vadd.f32 %v1961, %v2121
  %v2123 = vpop.f32.mrf.mxu0
  %v2124 = vpop.f32.mrf.mxu0
  %v2125 = vadd.f32 %v1964, %v2124
  %v2126 = vpop.f32.mrf.mxu0
  %2127 = vmatprep.mubr.bf16.mxu0 %v522
  %2128 = vmatmul.mubr.bf16.gmra.mxu0 %v521
  %v2129 = vpop.f32.mrf.mxu0
  %v2130 = vadd.f32 %v1969, %v2129
  %v2131 = vpop.f32.mrf.mxu0
  %v2132 = vpop.f32.mrf.mxu0
  %v2133 = vadd.f32 %v1972, %v2132
  %v2134 = vpop.f32.mrf.mxu0
  %2135 = vmatprep.mubr.bf16.mxu0 %v534
  %2136 = vmatmul.mubr.bf16.gmra.mxu0 %v533
  %v2137 = vpop.f32.mrf.mxu0
  %v2138 = vadd.f32 %v1977, %v2137
  %v2139 = vpop.f32.mrf.mxu0
  %v2140 = vpop.f32.mrf.mxu0
  %v2141 = vadd.f32 %v1980, %v2140
  %v2142 = vpop.f32.mrf.mxu0
  %2143 = vmatprep.mubr.bf16.mxu0 %v546
  %2144 = vmatmul.mubr.bf16.gmra.mxu0 %v545
  %v2145 = vpop.f32.mrf.mxu0
  %v2146 = vadd.f32 %v1985, %v2145
  %v2147 = vpop.f32.mrf.mxu0
  %v2148 = vpop.f32.mrf.mxu0
  %v2149 = vadd.f32 %v1988, %v2148
  %v2150 = vpop.f32.mrf.mxu0
  %2151 = vmatprep.mubr.bf16.mxu0 %v558
  %2152 = vmatmul.mubr.bf16.gmra.mxu0 %v557
  %v2153 = vpop.f32.mrf.mxu0
  %v2154 = vadd.f32 %v1993, %v2153
  %v2155 = vpop.f32.mrf.mxu0
  %v2156 = vpop.f32.mrf.mxu0
  %v2157 = vadd.f32 %v1996, %v2156
  %v2158 = vpop.f32.mrf.mxu0
  %2159 = vmatprep.mubr.bf16.mxu0 %v570
  %2160 = vmatmul.mubr.bf16.gmra.mxu0 %v569
  %v2161 = vpop.f32.mrf.mxu0
  %v2162 = vadd.f32 %v2001, %v2161
  %v2163 = vpop.f32.mrf.mxu0
  %v2164 = vpop.f32.mrf.mxu0
  %v2165 = vadd.f32 %v2004, %v2164
  %v2166 = vpop.f32.mrf.mxu0
  %2167 = vmatprep.mubr.bf16.mxu0 %v582
  %2168 = vmatmul.mubr.bf16.gmra.mxu0 %v581
  %v2169 = vpop.f32.mrf.mxu0
  %v2170 = vadd.f32 %v2009, %v2169
  %v2171 = vpop.f32.mrf.mxu0
  %v2172 = vpop.f32.mrf.mxu0
  %v2173 = vadd.f32 %v2012, %v2172
  %v2174 = vpop.f32.mrf.mxu0
  %2175 = vmatprep.mubr.bf16.mxu0 %v594
  %2176 = vmatmul.mubr.bf16.gmra.mxu0 %v593
  %v2177 = vpop.f32.mrf.mxu0
  %v2178 = vadd.f32 %v2017, %v2177
  %v2179 = vpop.f32.mrf.mxu0
  %v2180 = vpop.f32.mrf.mxu0
  %v2181 = vadd.f32 %v2020, %v2180
  %v2182 = vpop.f32.mrf.mxu0
  %2183 = vdwg.mxu0
  %2184 = vmatprep.subr.bf16.mxu0 0
  %2185 = vmatpush1.bf16.msra.mxu0 %v1231
  %2186 = vmatprep.subr.bf16.mxu0 0
  %2187 = vmatpush1.bf16.msra.mxu0 %v1230
  %2188 = vmatprep.subr.bf16.mxu0 0
  %2189 = vmatpush1.bf16.msra.mxu0 %v1229
  %2190 = vmatprep.subr.bf16.mxu0 0
  %2191 = vmatpush1.bf16.msra.mxu0 %v1228
  %2192 = vmatprep.subr.bf16.mxu0 0
  %2193 = vmatpush1.bf16.msra.mxu0 %v1227
  %2194 = vmatprep.subr.bf16.mxu0 0
  %2195 = vmatpush1.bf16.msra.mxu0 %v1226
  %2196 = vmatprep.subr.bf16.mxu0 0
  %2197 = vmatpush1.bf16.msra.mxu0 %v1225
  %2198 = vmatprep.subr.bf16.mxu0 0
  %2199 = vmatpush1.bf16.msra.mxu0 %v1224
  %2200 = vmatprep.subr.bf16.mxu0 0
  %2201 = vmatpush2.bf16.msra.mxu0 0
  %2202 = vmatprep.subr.bf16.mxu0 0
  %2203 = vmatpush2.bf16.msra.mxu0 0
  %2204 = vmatprep.subr.bf16.mxu0 0
  %2205 = vmatpush2.bf16.msra.mxu0 0
  %2206 = vmatprep.subr.bf16.mxu0 0
  %2207 = vmatpush2.bf16.msra.mxu0 0
  %2208 = vmatprep.subr.bf16.mxu0 0
  %2209 = vmatpush2.bf16.msra.mxu0 0
  %2210 = vmatprep.subr.bf16.mxu0 0
  %2211 = vmatpush2.bf16.msra.mxu0 0
  %2212 = vmatprep.subr.bf16.mxu0 0
  %2213 = vmatpush2.bf16.msra.mxu0 %v1377
  %2214 = vmatprep.subr.bf16.mxu0 0
  %2215 = vmatpush2.bf16.msra.mxu0 %v1232
  %2216 = vmatprep.mubr.bf16.mxu0 %v1325
  %2217 = vmatmul.mubr.bf16.gmra.mxu0 %v415
  %v2218 = vpop.f32.mrf.mxu0
  %v2219 = vadd.f32 %v2058, %v2218
  %v2220 = vpop.f32.mrf.mxu0
  %v2221 = vpop.f32.mrf.mxu0
  %v2222 = vadd.f32 %v2061, %v2221
  %v2223 = vpop.f32.mrf.mxu0
  %2224 = vmatprep.mubr.bf16.mxu0 %v1328
  %2225 = vmatmul.mubr.bf16.gmra.mxu0 %v427
  %v2226 = vpop.f32.mrf.mxu0
  %v2227 = vadd.f32 %v2066, %v2226
  %v2228 = vpop.f32.mrf.mxu0
  %v2229 = vpop.f32.mrf.mxu0
  %v2230 = vadd.f32 %v2069, %v2229
  %v2231 = vpop.f32.mrf.mxu0
  %2232 = vmatprep.mubr.bf16.mxu0 %v1331
  %2233 = vmatmul.mubr.bf16.gmra.mxu0 %v439
  %v2234 = vpop.f32.mrf.mxu0
  %v2235 = vadd.f32 %v2074, %v2234
  %v2236 = vpop.f32.mrf.mxu0
  %v2237 = vpop.f32.mrf.mxu0
  %v2238 = vadd.f32 %v2077, %v2237
  %v2239 = vpop.f32.mrf.mxu0
  %2240 = vmatprep.mubr.bf16.mxu0 %v1334
  %2241 = vmatmul.mubr.bf16.gmra.mxu0 %v451
  %v2242 = vpop.f32.mrf.mxu0
  %v2243 = vadd.f32 %v2082, %v2242
  %v2244 = vpop.f32.mrf.mxu0
  %v2245 = vpop.f32.mrf.mxu0
  %v2246 = vadd.f32 %v2085, %v2245
  %v2247 = vpop.f32.mrf.mxu0
  %2248 = vmatprep.mubr.bf16.mxu0 %v1337
  %2249 = vmatmul.mubr.bf16.gmra.mxu0 %v463
  %v2250 = vpop.f32.mrf.mxu0
  %v2251 = vadd.f32 %v2090, %v2250
  %v2252 = vpop.f32.mrf.mxu0
  %v2253 = vpop.f32.mrf.mxu0
  %v2254 = vadd.f32 %v2093, %v2253
  %v2255 = vpop.f32.mrf.mxu0
  %2256 = vmatprep.mubr.bf16.mxu0 %v1340
  %2257 = vmatmul.mubr.bf16.gmra.mxu0 %v475
  %v2258 = vpop.f32.mrf.mxu0
  %v2259 = vadd.f32 %v2098, %v2258
  %v2260 = vpop.f32.mrf.mxu0
  %v2261 = vpop.f32.mrf.mxu0
  %v2262 = vadd.f32 %v2101, %v2261
  %v2263 = vpop.f32.mrf.mxu0
  %2264 = vmatprep.mubr.bf16.mxu0 %v1343
  %2265 = vmatmul.mubr.bf16.gmra.mxu0 %v487
  %v2266 = vpop.f32.mrf.mxu0
  %v2267 = vadd.f32 %v2106, %v2266
  %v2268 = vpop.f32.mrf.mxu0
  %v2269 = vpop.f32.mrf.mxu0
  %v2270 = vadd.f32 %v2109, %v2269
  %v2271 = vpop.f32.mrf.mxu0
  %2272 = vmatprep.mubr.bf16.mxu0 %v1346
  %2273 = vmatmul.mubr.bf16.gmra.mxu0 %v499
  %v2274 = vpop.f32.mrf.mxu0
  %v2275 = vadd.f32 %v2114, %v2274
  %v2276 = vpop.f32.mrf.mxu0
  %v2277 = vpop.f32.mrf.mxu0
  %v2278 = vadd.f32 %v2117, %v2277
  %v2279 = vpop.f32.mrf.mxu0
  %2280 = vmatprep.mubr.bf16.mxu0 %v1349
  %2281 = vmatmul.mubr.bf16.gmra.mxu0 %v511
  %v2282 = vpop.f32.mrf.mxu0
  %v2283 = vadd.f32 %v2122, %v2282
  %v2284 = vpop.f32.mrf.mxu0
  %v2285 = vpop.f32.mrf.mxu0
  %v2286 = vadd.f32 %v2125, %v2285
  %v2287 = vpop.f32.mrf.mxu0
  %2288 = vmatprep.mubr.bf16.mxu0 %v1352
  %2289 = vmatmul.mubr.bf16.gmra.mxu0 %v523
  %v2290 = vpop.f32.mrf.mxu0
  %v2291 = vadd.f32 %v2130, %v2290
  %v2292 = vpop.f32.mrf.mxu0
  %v2293 = vpop.f32.mrf.mxu0
  %v2294 = vadd.f32 %v2133, %v2293
  %v2295 = vpop.f32.mrf.mxu0
  %2296 = vmatprep.mubr.bf16.mxu0 %v1355
  %2297 = vmatmul.mubr.bf16.gmra.mxu0 %v535
  %v2298 = vpop.f32.mrf.mxu0
  %v2299 = vadd.f32 %v2138, %v2298
  %v2300 = vpop.f32.mrf.mxu0
  %v2301 = vpop.f32.mrf.mxu0
  %v2302 = vadd.f32 %v2141, %v2301
  %v2303 = vpop.f32.mrf.mxu0
  %2304 = vmatprep.mubr.bf16.mxu0 %v1358
  %2305 = vmatmul.mubr.bf16.gmra.mxu0 %v547
  %v2306 = vpop.f32.mrf.mxu0
  %v2307 = vadd.f32 %v2146, %v2306
  %v2308 = vpop.f32.mrf.mxu0
  %v2309 = vpop.f32.mrf.mxu0
  %v2310 = vadd.f32 %v2149, %v2309
  %v2311 = vpop.f32.mrf.mxu0
  %2312 = vmatprep.mubr.bf16.mxu0 %v1361
  %2313 = vmatmul.mubr.bf16.gmra.mxu0 %v559
  %v2314 = vpop.f32.mrf.mxu0
  %v2315 = vadd.f32 %v2154, %v2314
  %v2316 = vpop.f32.mrf.mxu0
  %v2317 = vpop.f32.mrf.mxu0
  %v2318 = vadd.f32 %v2157, %v2317
  %v2319 = vpop.f32.mrf.mxu0
  %2320 = vmatprep.mubr.bf16.mxu0 %v1364
  %2321 = vmatmul.mubr.bf16.gmra.mxu0 %v571
  %v2322 = vpop.f32.mrf.mxu0
  %v2323 = vadd.f32 %v2162, %v2322
  %v2324 = vpop.f32.mrf.mxu0
  %v2325 = vpop.f32.mrf.mxu0
  %v2326 = vadd.f32 %v2165, %v2325
  %v2327 = vpop.f32.mrf.mxu0
  %2328 = vmatprep.mubr.bf16.mxu0 %v1367
  %2329 = vmatmul.mubr.bf16.gmra.mxu0 %v583
  %v2330 = vpop.f32.mrf.mxu0
  %v2331 = vadd.f32 %v2170, %v2330
  %v2332 = vpop.f32.mrf.mxu0
  %v2333 = vpop.f32.mrf.mxu0
  %v2334 = vadd.f32 %v2173, %v2333
  %v2335 = vpop.f32.mrf.mxu0
  %2336 = vmatprep.mubr.bf16.mxu0 %v1370
  %2337 = vmatmul.mubr.bf16.gmra.mxu0 %v595
  %v2338 = vpop.f32.mrf.mxu0
  %v2339 = vadd.f32 %v2178, %v2338
  %v2340 = vpop.f32.mrf.mxu0
  %v2341 = vpop.f32.mrf.mxu0
  %v2342 = vadd.f32 %v2181, %v2341
  %v2343 = vpop.f32.mrf.mxu0
  %2344 = vdwg.mxu0
  %v2345 = vmax.f32 %v2219, 0.0
  %v2346 = vmax.f32 %v2222, 0.0
  %v2347 = vmax.f32 %v2227, 0.0
  %v2348 = vmax.f32 %v2230, 0.0
  %v2349 = vmax.f32 %v2235, 0.0
  %v2350 = vmax.f32 %v2238, 0.0
  %v2351 = vmax.f32 %v2243, 0.0
  %v2352 = vmax.f32 %v2246, 0.0
  %v2353 = vmax.f32 %v2251, 0.0
  %v2354 = vmax.f32 %v2254, 0.0
  %v2355 = vmax.f32 %v2259, 0.0
  %v2356 = vmax.f32 %v2262, 0.0
  %v2357 = vmax.f32 %v2267, 0.0
  %v2358 = vmax.f32 %v2270, 0.0
  %v2359 = vmax.f32 %v2275, 0.0
  %v2360 = vmax.f32 %v2278, 0.0
  %v2361 = vmax.f32 %v2283, 0.0
  %v2362 = vmax.f32 %v2286, 0.0
  %v2363 = vmax.f32 %v2291, 0.0
  %v2364 = vmax.f32 %v2294, 0.0
  %v2365 = vmax.f32 %v2299, 0.0
  %v2366 = vmax.f32 %v2302, 0.0
  %v2367 = vmax.f32 %v2307, 0.0
  %v2368 = vmax.f32 %v2310, 0.0
  %v2369 = vmax.f32 %v2315, 0.0
  %v2370 = vmax.f32 %v2318, 0.0
  %v2371 = vmax.f32 %v2323, 0.0
  %v2372 = vmax.f32 %v2326, 0.0
  %v2373 = vmax.f32 %v2331, 0.0
  %v2374 = vmax.f32 %v2334, 0.0
  %v2375 = vmax.f32 %v2339, 0.0
  %v2376 = vmax.f32 %v2342, 0.0
  %v2377 = vpack.c.bf16 %v2346, %v2345
  %v2378 = vpack.c.bf16 %v2348, %v2347
  %v2379 = vpack.c.bf16 %v2350, %v2349
  %v2380 = vpack.c.bf16 %v2352, %v2351
  %v2381 = vpack.c.bf16 %v2354, %v2353
  %v2382 = vpack.c.bf16 %v2356, %v2355
  %v2383 = vpack.c.bf16 %v2358, %v2357
  %v2384 = vpack.c.bf16 %v2360, %v2359
  %v2385 = vpack.c.bf16 %v2362, %v2361
  %v2386 = vpack.c.bf16 %v2364, %v2363
  %v2387 = vpack.c.bf16 %v2366, %v2365
  %v2388 = vpack.c.bf16 %v2368, %v2367
  %v2389 = vpack.c.bf16 %v2370, %v2369
  %v2390 = vpack.c.bf16 %v2372, %v2371
  %v2391 = vpack.c.bf16 %v2374, %v2373
  %v2392 = vpack.c.bf16 %v2376, %v2375
  %v2393 = vld [vmem:[%s3] sm:$0xf]
  %v2394 = vld [vmem:[%s3 + $0x4] sm:$0xf]
  %v2395 = vld [vmem:[%s3 + $0x8] sm:$0xf]
  %v2396 = vld [vmem:[%s3 + $0xc] sm:$0xf]
  %v2397 = vld [vmem:[%s3 + $0x10] sm:$0xf]
  %v2398 = vld [vmem:[%s3 + $0x14] sm:$0xf]
  %v2399 = vld [vmem:[%s3 + $0x18] sm:$0xf]
  %v2400 = vld [vmem:[%s3 + $0x1c] sm:$0xf]
  %v2401 = vld [vmem:[%s3 + $0x20] sm:$0xf]
  %v2402 = vld [vmem:[%s3 + $0x24] sm:$0xf]
  %v2403 = vld [vmem:[%s3 + $0x28] sm:$0xf]
  %v2404 = vld [vmem:[%s3 + $0x2c] sm:$0xf]
  %v2405 = vld [vmem:[%s3 + $0x30] sm:$0xf]
  %v2406 = vld [vmem:[%s3 + $0x34] sm:$0xf]
  %v2407 = vld [vmem:[%s3 + $0x38] sm:$0xf]
  %v2408 = vld [vmem:[%s3 + $0x3c] sm:$0xf]
  %v2409 = vld [vmem:[%s4] sm:$0x1]
  %v2411 = vlaneseq
  %v2412 = vshrl.u32 %v2411, 7
  %v2413 = vsub.s32 0, %v2412
  %v2414 = vrot.slane %v2409, %v2413
  %v2432 = vunpack.c.l.b16 %v2393
  %v2433 = vunpack.c.l.b16 %v2394
  %v2434 = vunpack.c.l.b16 %v2395
  %v2435 = vunpack.c.l.b16 %v2396
  %v2436 = vunpack.c.l.b16 %v2397
  %v2437 = vunpack.c.l.b16 %v2398
  %v2438 = vunpack.c.l.b16 %v2399
  %v2439 = vunpack.c.l.b16 %v2400
  %v2440 = vunpack.c.l.b16 %v2401
  %v2441 = vunpack.c.l.b16 %v2402
  %v2442 = vunpack.c.l.b16 %v2403
  %v2443 = vunpack.c.l.b16 %v2404
  %v2444 = vunpack.c.l.b16 %v2405
  %v2445 = vunpack.c.l.b16 %v2406
  %v2446 = vunpack.c.l.b16 %v2407
  %v2447 = vunpack.c.l.b16 %v2408
  %v2448 = vpack.c.b16 %v2433, %v2432
  %v2449 = vpack.c.b16 %v2435, %v2434
  %v2450 = vpack.c.b16 %v2437, %v2436
  %v2451 = vpack.c.b16 %v2439, %v2438
  %v2452 = vpack.c.b16 %v2441, %v2440
  %v2453 = vpack.c.b16 %v2443, %v2442
  %v2454 = vpack.c.b16 %v2445, %v2444
  %v2455 = vpack.c.b16 %v2447, %v2446
  %2464 = vmatprep.subr.bf16.mxu0 0
  %2465 = vmatpush1.bf16.msra.mxu0 %v2455
  %2466 = vmatprep.subr.bf16.mxu0 0
  %2467 = vmatpush1.bf16.msra.mxu0 %v2454
  %2468 = vmatprep.subr.bf16.mxu0 0
  %2469 = vmatpush1.bf16.msra.mxu0 %v2453
  %2470 = vmatprep.subr.bf16.mxu0 0
  %2471 = vmatpush1.bf16.msra.mxu0 %v2452
  %2472 = vmatprep.subr.bf16.mxu0 0
  %2473 = vmatpush1.bf16.msra.mxu0 %v2451
  %2474 = vmatprep.subr.bf16.mxu0 0
  %2475 = vmatpush1.bf16.msra.mxu0 %v2450
  %2476 = vmatprep.subr.bf16.mxu0 0
  %2477 = vmatpush1.bf16.msra.mxu0 %v2449
  %2478 = vmatprep.subr.bf16.mxu0 0
  %2479 = vmatpush1.bf16.msra.mxu0 %v2448
  %2480 = vmatprep.subr.bf16.mxu0 0
  %2481 = vmatpush2.bf16.msra.mxu0 0
  %2482 = vmatprep.subr.bf16.mxu0 0
  %2483 = vmatpush2.bf16.msra.mxu0 0
  %2484 = vmatprep.subr.bf16.mxu0 0
  %2485 = vmatpush2.bf16.msra.mxu0 0
  %2486 = vmatprep.subr.bf16.mxu0 0
  %2487 = vmatpush2.bf16.msra.mxu0 0
  %2488 = vmatprep.subr.bf16.mxu0 0
  %2489 = vmatpush2.bf16.msra.mxu0 0
  %2490 = vmatprep.subr.bf16.mxu0 0
  %2491 = vmatpush2.bf16.msra.mxu0 0
  %2492 = vmatprep.subr.bf16.mxu0 0
  %2493 = vmatpush2.bf16.msra.mxu0 0
  %2494 = vmatprep.subr.bf16.mxu0 0
  %2495 = vmatpush2.bf16.msra.mxu0 0
  %2496 = vmatprep.mubr.bf16.mxu0 0
  %2497 = vmatmul.mubr.bf16.gmra.mxu0 %v2377
  %v2498 = vpop.f32.mrf.mxu0
  %v2499 = vadd.f32 %v2414, %v2498
  %v2500 = vpop.f32.mrf.mxu0
  %v2501 = vpop.f32.mrf.mxu0
  %v2502 = vadd.f32 %v2414, %v2501
  %v2503 = vpop.f32.mrf.mxu0
  %2504 = vmatprep.mubr.bf16.mxu0 0
  %2505 = vmatmul.mubr.bf16.gmra.mxu0 %v2378
  %v2506 = vpop.f32.mrf.mxu0
  %v2507 = vadd.f32 %v2414, %v2506
  %v2508 = vpop.f32.mrf.mxu0
  %v2509 = vpop.f32.mrf.mxu0
  %v2510 = vadd.f32 %v2414, %v2509
  %v2511 = vpop.f32.mrf.mxu0
  %2512 = vmatprep.mubr.bf16.mxu0 0
  %2513 = vmatmul.mubr.bf16.gmra.mxu0 %v2379
  %v2514 = vpop.f32.mrf.mxu0
  %v2515 = vadd.f32 %v2414, %v2514
  %v2516 = vpop.f32.mrf.mxu0
  %v2517 = vpop.f32.mrf.mxu0
  %v2518 = vadd.f32 %v2414, %v2517
  %v2519 = vpop.f32.mrf.mxu0
  %2520 = vmatprep.mubr.bf16.mxu0 0
  %2521 = vmatmul.mubr.bf16.gmra.mxu0 %v2380
  %v2522 = vpop.f32.mrf.mxu0
  %v2523 = vadd.f32 %v2414, %v2522
  %v2524 = vpop.f32.mrf.mxu0
  %v2525 = vpop.f32.mrf.mxu0
  %v2526 = vadd.f32 %v2414, %v2525
  %v2527 = vpop.f32.mrf.mxu0
  %2528 = vmatprep.mubr.bf16.mxu0 0
  %2529 = vmatmul.mubr.bf16.gmra.mxu0 %v2381
  %v2530 = vpop.f32.mrf.mxu0
  %v2531 = vadd.f32 %v2414, %v2530
  %v2532 = vpop.f32.mrf.mxu0
  %v2533 = vpop.f32.mrf.mxu0
  %v2534 = vadd.f32 %v2414, %v2533
  %v2535 = vpop.f32.mrf.mxu0
  %2536 = vmatprep.mubr.bf16.mxu0 0
  %2537 = vmatmul.mubr.bf16.gmra.mxu0 %v2382
  %v2538 = vpop.f32.mrf.mxu0
  %v2539 = vadd.f32 %v2414, %v2538
  %v2540 = vpop.f32.mrf.mxu0
  %v2541 = vpop.f32.mrf.mxu0
  %v2542 = vadd.f32 %v2414, %v2541
  %v2543 = vpop.f32.mrf.mxu0
  %2544 = vmatprep.mubr.bf16.mxu0 0
  %2545 = vmatmul.mubr.bf16.gmra.mxu0 %v2383
  %v2546 = vpop.f32.mrf.mxu0
  %v2547 = vadd.f32 %v2414, %v2546
  %v2548 = vpop.f32.mrf.mxu0
  %v2549 = vpop.f32.mrf.mxu0
  %v2550 = vadd.f32 %v2414, %v2549
  %v2551 = vpop.f32.mrf.mxu0
  %2552 = vmatprep.mubr.bf16.mxu0 0
  %2553 = vmatmul.mubr.bf16.gmra.mxu0 %v2384
  %v2554 = vpop.f32.mrf.mxu0
  %v2555 = vadd.f32 %v2414, %v2554
  %v2556 = vpop.f32.mrf.mxu0
  %v2557 = vpop.f32.mrf.mxu0
  %v2558 = vadd.f32 %v2414, %v2557
  %v2559 = vpop.f32.mrf.mxu0
  %2560 = vmatprep.mubr.bf16.mxu0 0
  %2561 = vmatmul.mubr.bf16.gmra.mxu0 %v2385
  %v2562 = vpop.f32.mrf.mxu0
  %v2563 = vadd.f32 %v2414, %v2562
  %v2564 = vpop.f32.mrf.mxu0
  %v2565 = vpop.f32.mrf.mxu0
  %v2566 = vadd.f32 %v2414, %v2565
  %v2567 = vpop.f32.mrf.mxu0
  %2568 = vmatprep.mubr.bf16.mxu0 0
  %2569 = vmatmul.mubr.bf16.gmra.mxu0 %v2386
  %v2570 = vpop.f32.mrf.mxu0
  %v2571 = vadd.f32 %v2414, %v2570
  %v2572 = vpop.f32.mrf.mxu0
  %v2573 = vpop.f32.mrf.mxu0
  %v2574 = vadd.f32 %v2414, %v2573
  %v2575 = vpop.f32.mrf.mxu0
  %2576 = vmatprep.mubr.bf16.mxu0 0
  %2577 = vmatmul.mubr.bf16.gmra.mxu0 %v2387
  %v2578 = vpop.f32.mrf.mxu0
  %v2579 = vadd.f32 %v2414, %v2578
  %v2580 = vpop.f32.mrf.mxu0
  %v2581 = vpop.f32.mrf.mxu0
  %v2582 = vadd.f32 %v2414, %v2581
  %v2583 = vpop.f32.mrf.mxu0
  %2584 = vmatprep.mubr.bf16.mxu0 0
  %2585 = vmatmul.mubr.bf16.gmra.mxu0 %v2388
  %v2586 = vpop.f32.mrf.mxu0
  %v2587 = vadd.f32 %v2414, %v2586
  %v2588 = vpop.f32.mrf.mxu0
  %v2589 = vpop.f32.mrf.mxu0
  %v2590 = vadd.f32 %v2414, %v2589
  %v2591 = vpop.f32.mrf.mxu0
  %2592 = vmatprep.mubr.bf16.mxu0 0
  %2593 = vmatmul.mubr.bf16.gmra.mxu0 %v2389
  %v2594 = vpop.f32.mrf.mxu0
  %v2595 = vadd.f32 %v2414, %v2594
  %v2596 = vpop.f32.mrf.mxu0
  %v2597 = vpop.f32.mrf.mxu0
  %v2598 = vadd.f32 %v2414, %v2597
  %v2599 = vpop.f32.mrf.mxu0
  %2600 = vmatprep.mubr.bf16.mxu0 0
  %2601 = vmatmul.mubr.bf16.gmra.mxu0 %v2390
  %v2602 = vpop.f32.mrf.mxu0
  %v2603 = vadd.f32 %v2414, %v2602
  %v2604 = vpop.f32.mrf.mxu0
  %v2605 = vpop.f32.mrf.mxu0
  %v2606 = vadd.f32 %v2414, %v2605
  %v2607 = vpop.f32.mrf.mxu0
  %2608 = vmatprep.mubr.bf16.mxu0 0
  %2609 = vmatmul.mubr.bf16.gmra.mxu0 %v2391
  %v2610 = vpop.f32.mrf.mxu0
  %v2611 = vadd.f32 %v2414, %v2610
  %v2612 = vpop.f32.mrf.mxu0
  %v2613 = vpop.f32.mrf.mxu0
  %v2614 = vadd.f32 %v2414, %v2613
  %v2615 = vpop.f32.mrf.mxu0
  %2616 = vmatprep.mubr.bf16.mxu0 0
  %2617 = vmatmul.mubr.bf16.gmra.mxu0 %v2392
  %v2618 = vpop.f32.mrf.mxu0
  %v2619 = vadd.f32 %v2414, %v2618
  %v2620 = vpop.f32.mrf.mxu0
  %v2621 = vpop.f32.mrf.mxu0
  %v2622 = vadd.f32 %v2414, %v2621
  %v2623 = vpop.f32.mrf.mxu0
  %2624 = vdwg.mxu0
  %2625 = vst [vmem:[%s5] sm:$0xff] %v2499
  %2626 = vst [vmem:[%s5 + $0x8] sm:$0xff] %v2502
  %2627 = vst [vmem:[%s5 + $0x10] sm:$0xff] %v2507
  %2628 = vst [vmem:[%s5 + $0x18] sm:$0xff] %v2510
  %2629 = vst [vmem:[%s5 + $0x20] sm:$0xff] %v2515
  %2630 = vst [vmem:[%s5 + $0x28] sm:$0xff] %v2518
  %2631 = vst [vmem:[%s5 + $0x30] sm:$0xff] %v2523
  %2632 = vst [vmem:[%s5 + $0x38] sm:$0xff] %v2526
  %2633 = vst [vmem:[%s5 + $0x40] sm:$0xff] %v2531
  %2634 = vst [vmem:[%s5 + $0x48] sm:$0xff] %v2534
  %2635 = vst [vmem:[%s5 + $0x50] sm:$0xff] %v2539
  %2636 = vst [vmem:[%s5 + $0x58] sm:$0xff] %v2542
  %2637 = vst [vmem:[%s5 + $0x60] sm:$0xff] %v2547
  %2638 = vst [vmem:[%s5 + $0x68] sm:$0xff] %v2550
  %2639 = vst [vmem:[%s5 + $0x70] sm:$0xff] %v2555
  %2640 = vst [vmem:[%s5 + $0x78] sm:$0xff] %v2558
  %2641 = vst [vmem:[%s5 + $0x80] sm:$0xff] %v2563
  %2642 = vst [vmem:[%s5 + $0x88] sm:$0xff] %v2566
  %2643 = vst [vmem:[%s5 + $0x90] sm:$0xff] %v2571
  %2644 = vst [vmem:[%s5 + $0x98] sm:$0xff] %v2574
  %2645 = vst [vmem:[%s5 + $0xa0] sm:$0xff] %v2579
  %2646 = vst [vmem:[%s5 + $0xa8] sm:$0xff] %v2582
  %2647 = vst [vmem:[%s5 + $0xb0] sm:$0xff] %v2587
  %2648 = vst [vmem:[%s5 + $0xb8] sm:$0xff] %v2590
  %2649 = vst [vmem:[%s5 + $0xc0] sm:$0xff] %v2595
  %2650 = vst [vmem:[%s5 + $0xc8] sm:$0xff] %v2598
  %2651 = vst [vmem:[%s5 + $0xd0] sm:$0xff] %v2603
  %2652 = vst [vmem:[%s5 + $0xd8] sm:$0xff] %v2606
  %2653 = vst [vmem:[%s5 + $0xe0] sm:$0xff] %v2611
  %2654 = vst [vmem:[%s5 + $0xe8] sm:$0xff] %v2614
  %2655 = vst [vmem:[%s5 + $0xf0] sm:$0xff] %v2619
  %2656 = vst [vmem:[%s5 + $0xf8] sm:$0xff] %v2622
  // Predicated region
  $region22: #{_lambda_.1} parent=0 // pred_check
    _
  $region23: #{_lambda_.1} parent=0 // pred_check_branch
    %2658 = sbr.rel (0) target = $region25
  $region24: #{_lambda_.1} parent=0 // pred_region
    _
  $region25: #{_lambda_.1} parent=0 // pred_fallthru
    _
  // Predicated region
  $region26: #{_lambda_.1} parent=0 // pred_check
    _
  $region27: #{_lambda_.1} parent=0 // pred_check_branch
    %2660 = sbr.rel (0) target = $region29
  $region28: #{_lambda_.1} parent=0 // pred_region
    _
  $region29: #{_lambda_.1} parent=0 // pred_fallthru
    _

</llo_original>
